<compile_context>
chip_gen: v5e
topology: v5e:2x2
jax: 0.10.0
libtpu: 0.0.40
codegen_flags: <defaults>
</compile_context>

<pallas_src>
import jax
import jax.numpy as jnp
from jax import lax
from jax.experimental import pallas as pl
from jax.experimental.pallas import tpu as pltpu


def _round_up(x, m):
    return ((x + m - 1) // m) * m


def _vmem_limit_bytes():
    # Per-generation scoped-VMEM cap: ~96 MiB on v5e/v6e (128 MiB physical),
    # ~40 MiB on v7x (64 MiB physical per TensorCore); safe fallback 32 MiB.
    try:
        cap = int(pltpu.get_tpu_info().vmem_capacity_bytes)
    except Exception:
        return 32 * 1024 * 1024
    if cap <= 64 * 1024 * 1024:
        return 40 * 1024 * 1024          # v7x-class
    return 96 * 1024 * 1024              # v5e / v6e


def _make_stem_kernel(Wp, C, L, LC, n_chunks, Lpad, K9, F, inv_hw):
    """Whole-image conv3x3 + bias + ReLU + global-average-pool kernel."""

    def kernel(x_ref, wtap_ref, bconv_ref, mask_ref, out_ref, scr_ref):
        # Zero the chunk-padding tail rows of the im2col scratch (static).
        if Lpad > L:                                   # python-static branch
            scr_ref[L:Lpad, :] = jnp.zeros((Lpad - L, K9), jnp.float32)

        # In-VMEM im2col: 9 shifted copies of the flattened padded image, so
        # the conv below is ONE K=9C contraction instead of nine K=C matmuls.
        for k in range(9):                             # static 3x3 taps
            kh, kw = divmod(k, 3)
            scr_ref[0:L, k * C:(k + 1) * C] = (
                x_ref[0, pl.ds(kh * Wp + kw, L), :].astype(jnp.float32))

        # Chunked conv -> bias/ReLU -> masked pool; both matmuls on the MXU,
        # only one (LC, F) f32 activation chunk live at a time.
        def chunk(ci, pooled):
            start = pl.multiple_of(ci * LC, 128)       # LC is a multiple of 128
            patch = scr_ref[pl.ds(start, LC), :].astype(jnp.bfloat16)  # (LC, 9C)
            hc = jnp.dot(patch, wtap_ref[...],
                         preferred_element_type=jnp.float32)           # (LC, F)
            hc = jnp.maximum(hc + bconv_ref[...], 0.0)  # f32 elementwise (v5e-safe)
            # GAP partial sum on the MXU; mask zeroes wrap columns + pad tail.
            return pooled + jnp.dot(mask_ref[ci], hc,
                                    preferred_element_type=jnp.float32)

        pooled = lax.fori_loop(0, n_chunks, chunk,
                               jnp.zeros((1, F), jnp.float32))
        out_ref[0] = pooled * inv_hw                    # (1, F) GAP features

    return kernel


def image_encoder_forward(x_nchw, wconv, bconv, wfc, bfc):
    """x_nchw: (B, C, H, W) f32; wconv: (F, C, 3, 3); bconv: (F,);
    wfc: (F, E); bfc: (E,). Returns (B, E) f32."""
    B, C, H, W = x_nchw.shape
    F = wconv.shape[0]                    # n_feats
    Hp, Wp = H + 2, W + 2                 # SAME-padded spatial dims
    K9 = 9 * C
    L = H * Wp                            # flattened conv-output rows (wrap cols masked)
    LC = min(512, _round_up(L, 128))      # chunk rows, multiple of 128
    n_chunks = -(-L // LC)
    Lpad = n_chunks * LC
    Lflat = Hp * Wp + 2                   # flattened padded image (+1 halo each end)

    # --- wrapper preprocessing: transpose+cast, pad, reshape (no tile copies)
    x = jnp.transpose(x_nchw, (0, 2, 3, 1)).astype(jnp.bfloat16)         # NHWC bf16
    xp = jnp.pad(x, ((0, 0), (1, 1), (1, 1), (0, 0)))                    # spatial pad
    xf = jnp.pad(xp.reshape(B, Hp * Wp, C), ((0, 0), (1, 1), (0, 0)))    # (B, Lflat, C)

    # conv weight (F, C, 3, 3) -> (9C, F); row index = (kh*3 + kw)*C + c
    wtaps = jnp.transpose(wconv, (2, 3, 1, 0)).reshape(K9, F).astype(jnp.bfloat16)
    bconv2 = bconv.reshape(1, F).astype(jnp.float32)

    # Pooling mask: 1 for valid conv-output rows, 0 for the 2 wrap columns per
    # image row and for the chunk-padding tail rows.
    r = jnp.arange(Lpad, dtype=jnp.int32)
    col = r % Wp
    mask = ((r < L) & (col >= 1) & (col <= W)).astype(jnp.float32)
    mask = mask.reshape(n_chunks, 1, LC)

    kernel = _make_stem_kernel(Wp, C, L, LC, n_chunks, Lpad, K9, F,
                               1.0 / float(H * W))

    feats = pl.pallas_call(
        kernel,
        out_shape=jax.ShapeDtypeStruct((B, 1, F), jnp.float32),
        grid=(B,),                                    # whole image per step
        in_specs=[
            pl.BlockSpec((1, Lflat, C), lambda b: (b, 0, 0)),      # image
            pl.BlockSpec((K9, F), lambda b: (0, 0)),               # conv taps
            pl.BlockSpec((1, F), lambda b: (0, 0)),                # conv bias
            pl.BlockSpec((n_chunks, 1, LC), lambda b: (0, 0, 0)),  # pool mask
        ],
        out_specs=pl.BlockSpec((1, 1, F), lambda b: (b, 0, 0)),
        scratch_shapes=[pltpu.VMEM((Lpad, K9), jnp.float32)],      # im2col scratch
        compiler_params=pltpu.CompilerParams(
            dimension_semantics=("parallel",),         # batch -> v7x 2nd core
            vmem_limit_bytes=_vmem_limit_bytes()),
    )(xf, wtaps, bconv2, mask)

    pooled = feats[:, 0, :]                            # (B, n_feats) GAP features
    # dropout(p=0.2) is identity at inference; fc as one well-shaped XLA matmul
    # (keeps wfc/bfc out of the kernel's VMEM budget).
    return pooled @ wfc + bfc


def _reference(x_nchw, wconv, bconv, wfc, bfc):
    h = jax.lax.conv_general_dilated(
        x_nchw, wconv, window_strides=(1, 1), padding="SAME",
        dimension_numbers=("NCHW", "OIHW", "NCHW"))
    h = jnp.maximum(h + bconv[None, :, None, None], 0.0)
    feats = h.mean(axis=(2, 3))          # global average pool -> (B, n_feats)
    return feats @ wfc + bfc             # dropout is identity at inference


if __name__ == "__main__":
    B, C, H, W = 2, 4, 16, 16
    n_feats, embed_size = 32, 16

    key = jax.random.PRNGKey(0)
    kx, kw1, kb1, kw2, kb2 = jax.random.split(key, 5)
    x = jax.random.normal(kx, (B, C, H, W), dtype=jnp.float32)
    wconv = 0.1 * jax.random.normal(kw1, (n_feats, C, 3, 3), dtype=jnp.float32)
    bconv = 0.1 * jax.random.normal(kb1, (n_feats,), dtype=jnp.float32)
    wfc = 0.1 * jax.random.normal(kw2, (n_feats, embed_size), dtype=jnp.float32)
    bfc = 0.1 * jax.random.normal(kb2, (embed_size,), dtype=jnp.float32)

    out = jax.block_until_ready(image_encoder_forward(x, wconv, bconv, wfc, bfc))
    ref = _reference(x, wconv, bconv, wfc, bfc)

    assert out.shape == (B, embed_size), out.shape
    # bf16 MXU operands vs f32 reference -> relaxed tolerance
    assert jnp.allclose(out, ref, atol=1e-2, rtol=1e-2), \
        f"max abs err {jnp.max(jnp.abs(out - ref))}"
    print("KERNEL_OK")
</pallas_src>

<mosaic_0001>
module attributes {stable_mosaic.version = 11 : i64} {
  func.func @kernel(%arg0: i32, %arg1: memref<1x326x4xbf16, #tpu.memory_space<vmem>>, %arg2: memref<36x32xbf16, #tpu.memory_space<vmem>>, %arg3: memref<1x32xf32, #tpu.memory_space<vmem>>, %arg4: memref<1x1x384xf32, #tpu.memory_space<vmem>>, %arg5: memref<1x1x32xf32, #tpu.memory_space<vmem>>, %arg6: memref<384x36xf32, #tpu.memory_space<vmem>>) attributes {dimension_semantics = [#tpu.dimension_semantics<parallel>], iteration_bounds = array<i64: 2>, scalar_prefetch = 0 : i64, scratch_operands = 1 : i64, tpu.core_type = #tpu.core_type<tc>, window_params = [{transform_indices = @transform_0, window_bounds = array<i64: 1, 326, 4>}, {pipeline_mode = #tpu.pipeline_mode<synchronous>, transform_indices = @transform_1, window_bounds = array<i64: 36, 32>}, {pipeline_mode = #tpu.pipeline_mode<synchronous>, transform_indices = @transform_2, window_bounds = array<i64: 1, 32>}, {pipeline_mode = #tpu.pipeline_mode<synchronous>, transform_indices = @transform_3, window_bounds = array<i64: 1, 1, 384>}, {transform_indices = @transform_4, window_bounds = array<i64: 1, 1, 32>}]} {
    %cst = arith.constant 0.000000e+00 : f32
    %0 = vector.broadcast %cst : f32 to vector<96x36xf32>
    %c288 = arith.constant 288 : index
    %c0 = arith.constant 0 : index
    %1 = vector.load %arg6[%c288, %c0] : memref<384x36xf32, #tpu.memory_space<vmem>>, vector<96x36xf32>
    tpu.vector_store %arg6[%c288, %c0], %0 {strides = array<i32>} : memref<384x36xf32, #tpu.memory_space<vmem>>, vector<96x36xf32>,
    %c0_0 = arith.constant 0 : index
    %c0_1 = arith.constant 0 : index
    %c0_2 = arith.constant 0 : index
    %2 = vector.load %arg1[%c0_0, %c0_1, %c0_2] : memref<1x326x4xbf16, #tpu.memory_space<vmem>>, vector<1x288x4xbf16>
    %3 = vector.shape_cast %2 : vector<1x288x4xbf16> to vector<288x4xbf16>
    %4 = arith.extf %3 : vector<288x4xbf16> to vector<288x4xf32>
    %c0_3 = arith.constant 0 : index
    %c0_4 = arith.constant 0 : index
    %5 = vector.load %arg6[%c0_3, %c0_4] : memref<384x36xf32, #tpu.memory_space<vmem>>, vector<288x4xf32>
    tpu.vector_store %arg6[%c0_3, %c0_4], %4 {strides = array<i32>} : memref<384x36xf32, #tpu.memory_space<vmem>>, vector<288x4xf32>,
    %c0_5 = arith.constant 0 : index
    %c1 = arith.constant 1 : index
    %c0_6 = arith.constant 0 : index
    %6 = vector.load %arg1[%c0_5, %c1, %c0_6] : memref<1x326x4xbf16, #tpu.memory_space<vmem>>, vector<1x288x4xbf16>
    %7 = vector.shape_cast %6 : vector<1x288x4xbf16> to vector<288x4xbf16>
    %8 = arith.extf %7 : vector<288x4xbf16> to vector<288x4xf32>
    %c0_7 = arith.constant 0 : index
    %c4 = arith.constant 4 : index
    %9 = vector.load %arg6[%c0_7, %c4] : memref<384x36xf32, #tpu.memory_space<vmem>>, vector<288x4xf32>
    tpu.vector_store %arg6[%c0_7, %c4], %8 {strides = array<i32>} : memref<384x36xf32, #tpu.memory_space<vmem>>, vector<288x4xf32>,
    %c0_8 = arith.constant 0 : index
    %c2 = arith.constant 2 : index
    %c0_9 = arith.constant 0 : index
    %10 = vector.load %arg1[%c0_8, %c2, %c0_9] : memref<1x326x4xbf16, #tpu.memory_space<vmem>>, vector<1x288x4xbf16>
    %11 = vector.shape_cast %10 : vector<1x288x4xbf16> to vector<288x4xbf16>
    %12 = arith.extf %11 : vector<288x4xbf16> to vector<288x4xf32>
    %c0_10 = arith.constant 0 : index
    %c8 = arith.constant 8 : index
    %13 = vector.load %arg6[%c0_10, %c8] : memref<384x36xf32, #tpu.memory_space<vmem>>, vector<288x4xf32>
    tpu.vector_store %arg6[%c0_10, %c8], %12 {strides = array<i32>} : memref<384x36xf32, #tpu.memory_space<vmem>>, vector<288x4xf32>,
    %c0_11 = arith.constant 0 : index
    %c18 = arith.constant 18 : index
    %c0_12 = arith.constant 0 : index
    %14 = vector.load %arg1[%c0_11, %c18, %c0_12] : memref<1x326x4xbf16, #tpu.memory_space<vmem>>, vector<1x288x4xbf16>
    %15 = vector.shape_cast %14 : vector<1x288x4xbf16> to vector<288x4xbf16>
    %16 = arith.extf %15 : vector<288x4xbf16> to vector<288x4xf32>
    %c0_13 = arith.constant 0 : index
    %c12 = arith.constant 12 : index
    %17 = vector.load %arg6[%c0_13, %c12] : memref<384x36xf32, #tpu.memory_space<vmem>>, vector<288x4xf32>
    tpu.vector_store %arg6[%c0_13, %c12], %16 {strides = array<i32>} : memref<384x36xf32, #tpu.memory_space<vmem>>, vector<288x4xf32>,
    %c0_14 = arith.constant 0 : index
    %c19 = arith.constant 19 : index
    %c0_15 = arith.constant 0 : index
    %18 = vector.load %arg1[%c0_14, %c19, %c0_15] : memref<1x326x4xbf16, #tpu.memory_space<vmem>>, vector<1x288x4xbf16>
    %19 = vector.shape_cast %18 : vector<1x288x4xbf16> to vector<288x4xbf16>
    %20 = arith.extf %19 : vector<288x4xbf16> to vector<288x4xf32>
    %c0_16 = arith.constant 0 : index
    %c16 = arith.constant 16 : index
    %21 = vector.load %arg6[%c0_16, %c16] : memref<384x36xf32, #tpu.memory_space<vmem>>, vector<288x4xf32>
    tpu.vector_store %arg6[%c0_16, %c16], %20 {strides = array<i32>} : memref<384x36xf32, #tpu.memory_space<vmem>>, vector<288x4xf32>,
    %c0_17 = arith.constant 0 : index
    %c20 = arith.constant 20 : index
    %c0_18 = arith.constant 0 : index
    %22 = vector.load %arg1[%c0_17, %c20, %c0_18] : memref<1x326x4xbf16, #tpu.memory_space<vmem>>, vector<1x288x4xbf16>
    %23 = vector.shape_cast %22 : vector<1x288x4xbf16> to vector<288x4xbf16>
    %24 = arith.extf %23 : vector<288x4xbf16> to vector<288x4xf32>
    %c0_19 = arith.constant 0 : index
    %c20_20 = arith.constant 20 : index
    %25 = vector.load %arg6[%c0_19, %c20_20] : memref<384x36xf32, #tpu.memory_space<vmem>>, vector<288x4xf32>
    tpu.vector_store %arg6[%c0_19, %c20_20], %24 {strides = array<i32>} : memref<384x36xf32, #tpu.memory_space<vmem>>, vector<288x4xf32>,
    %c0_21 = arith.constant 0 : index
    %c36 = arith.constant 36 : index
    %c0_22 = arith.constant 0 : index
    %26 = vector.load %arg1[%c0_21, %c36, %c0_22] : memref<1x326x4xbf16, #tpu.memory_space<vmem>>, vector<1x288x4xbf16>
    %27 = vector.shape_cast %26 : vector<1x288x4xbf16> to vector<288x4xbf16>
    %28 = arith.extf %27 : vector<288x4xbf16> to vector<288x4xf32>
    %c0_23 = arith.constant 0 : index
    %c24 = arith.constant 24 : index
    %29 = vector.load %arg6[%c0_23, %c24] : memref<384x36xf32, #tpu.memory_space<vmem>>, vector<288x4xf32>
    tpu.vector_store %arg6[%c0_23, %c24], %28 {strides = array<i32>} : memref<384x36xf32, #tpu.memory_space<vmem>>, vector<288x4xf32>,
    %c0_24 = arith.constant 0 : index
    %c37 = arith.constant 37 : index
    %c0_25 = arith.constant 0 : index
    %30 = vector.load %arg1[%c0_24, %c37, %c0_25] : memref<1x326x4xbf16, #tpu.memory_space<vmem>>, vector<1x288x4xbf16>
    %31 = vector.shape_cast %30 : vector<1x288x4xbf16> to vector<288x4xbf16>
    %32 = arith.extf %31 : vector<288x4xbf16> to vector<288x4xf32>
    %c0_26 = arith.constant 0 : index
    %c28 = arith.constant 28 : index
    %33 = vector.load %arg6[%c0_26, %c28] : memref<384x36xf32, #tpu.memory_space<vmem>>, vector<288x4xf32>
    tpu.vector_store %arg6[%c0_26, %c28], %32 {strides = array<i32>} : memref<384x36xf32, #tpu.memory_space<vmem>>, vector<288x4xf32>,
    %c0_27 = arith.constant 0 : index
    %c38 = arith.constant 38 : index
    %c0_28 = arith.constant 0 : index
    %34 = vector.load %arg1[%c0_27, %c38, %c0_28] : memref<1x326x4xbf16, #tpu.memory_space<vmem>>, vector<1x288x4xbf16>
    %35 = vector.shape_cast %34 : vector<1x288x4xbf16> to vector<288x4xbf16>
    %36 = arith.extf %35 : vector<288x4xbf16> to vector<288x4xf32>
    %c0_29 = arith.constant 0 : index
    %c32 = arith.constant 32 : index
    %37 = vector.load %arg6[%c0_29, %c32] : memref<384x36xf32, #tpu.memory_space<vmem>>, vector<288x4xf32>
    tpu.vector_store %arg6[%c0_29, %c32], %36 {strides = array<i32>} : memref<384x36xf32, #tpu.memory_space<vmem>>, vector<288x4xf32>,
    %cst_30 = arith.constant 0.000000e+00 : f32
    %38 = vector.broadcast %cst_30 : f32 to vector<1x32xf32>
    %c0_i32 = arith.constant 0 : i32
    %c384_i32 = arith.constant 384 : i32
    %39 = arith.muli %c0_i32, %c384_i32 : i32
    %40 = tpu.assume_multiple %39, 128 : i32
    %41 = arith.index_cast %40 : i32 to index
    %c0_31 = arith.constant 0 : index
    %42 = vector.load %arg6[%41, %c0_31] : memref<384x36xf32, #tpu.memory_space<vmem>>, vector<384x36xf32>
    %43 = arith.truncf %42 : vector<384x36xf32> to vector<384x36xbf16>
    %c0_32 = arith.constant 0 : index
    %c0_33 = arith.constant 0 : index
    %44 = vector.load %arg2[%c0_32, %c0_33] : memref<36x32xbf16, #tpu.memory_space<vmem>>, vector<36x32xbf16>
    %cst_34 = arith.constant dense<0.000000e+00> : vector<384x32xf32>
    %45 = tpu.matmul %43, %44, %cst_34 {dimension_numbers = #tpu.dot_dimension_numbers<[1], [0], [0], [1], [0, 0, 1, 1], [], []>} : vector<384x36xbf16>, vector<36x32xbf16>, vector<384x32xf32> -> vector<384x32xf32>
    %c0_35 = arith.constant 0 : index
    %c0_36 = arith.constant 0 : index
    %46 = vector.load %arg3[%c0_35, %c0_36] : memref<1x32xf32, #tpu.memory_space<vmem>>, vector<1x32xf32>
    %47 = vector.broadcast %46 : vector<1x32xf32> to vector<384x32xf32>
    %48 = arith.addf %45, %47 : vector<384x32xf32>
    %cst_37 = arith.constant 0.000000e+00 : f32
    %49 = vector.broadcast %cst_37 : f32 to vector<384x32xf32>
    %50 = arith.maximumf %48, %49 : vector<384x32xf32>
    %51 = arith.index_cast %c0_i32 : i32 to index
    %c0_38 = arith.constant 0 : index
    %c0_39 = arith.constant 0 : index
    %52 = vector.load %arg4[%51, %c0_38, %c0_39] : memref<1x1x384xf32, #tpu.memory_space<vmem>>, vector<1x1x384xf32>
    %53 = vector.shape_cast %52 : vector<1x1x384xf32> to vector<1x384xf32>
    %cst_40 = arith.constant dense<0.000000e+00> : vector<1x32xf32>
    %54 = tpu.matmul %53, %50, %cst_40 {dimension_numbers = #tpu.dot_dimension_numbers<[1], [0], [0], [1], [0, 0, 1, 1], [], []>} : vector<1x384xf32>, vector<384x32xf32>, vector<1x32xf32> -> vector<1x32xf32>
    %55 = arith.addf %38, %54 : vector<1x32xf32>
    %c1_i32 = arith.constant 1 : i32
    %cst_41 = arith.constant 3.906250e-03 : f32
    %56 = vector.broadcast %cst_41 : f32 to vector<1x32xf32>
    %57 = arith.mulf %55, %56 : vector<1x32xf32>
    %c0_42 = arith.constant 0 : index
    %c0_43 = arith.constant 0 : index
    %c0_44 = arith.constant 0 : index
    %58 = vector.load %arg5[%c0_42, %c0_43, %c0_44] : memref<1x1x32xf32, #tpu.memory_space<vmem>>, vector<1x1x32xf32>
    %59 = vector.shape_cast %58 : vector<1x1x32xf32> to vector<1x32xf32>
    %60 = vector.shape_cast %57 : vector<1x32xf32> to vector<1x1x32xf32>
    tpu.vector_store %arg5[%c0_42, %c0_43, %c0_44], %60 {strides = array<i32>} : memref<1x1x32xf32, #tpu.memory_space<vmem>>, vector<1x1x32xf32>,
    return
  }
  func.func @transform_0(%arg0: i32) -> (i32, i32, i32) {
    %c0_i32 = arith.constant 0 : i32
    %c0_i32_0 = arith.constant 0 : i32
    %c0_i32_1 = arith.constant 0 : i32
    return %arg0, %c0_i32, %c0_i32_0 : i32, i32, i32
  }
  func.func @transform_1(%arg0: i32) -> (i32, i32) {
    %c0_i32 = arith.constant 0 : i32
    %c0_i32_0 = arith.constant 0 : i32
    %c0_i32_1 = arith.constant 0 : i32
    return %c0_i32, %c0_i32_0 : i32, i32
  }
  func.func @transform_2(%arg0: i32) -> (i32, i32) {
    %c0_i32 = arith.constant 0 : i32
    %c0_i32_0 = arith.constant 0 : i32
    %c0_i32_1 = arith.constant 0 : i32
    return %c0_i32, %c0_i32_0 : i32, i32
  }
  func.func @transform_3(%arg0: i32) -> (i32, i32, i32) {
    %c0_i32 = arith.constant 0 : i32
    %c0_i32_0 = arith.constant 0 : i32
    %c0_i32_1 = arith.constant 0 : i32
    %c0_i32_2 = arith.constant 0 : i32
    return %c0_i32, %c0_i32_0, %c0_i32_1 : i32, i32, i32
  }
  func.func @transform_4(%arg0: i32) -> (i32, i32, i32) {
    %c0_i32 = arith.constant 0 : i32
    %c0_i32_0 = arith.constant 0 : i32
    %c0_i32_1 = arith.constant 0 : i32
    return %arg0, %c0_i32, %c0_i32_0 : i32, i32, i32
  }
}

</mosaic_0001>

<llo_original>
// kernel: tpu_custom_call.1
$region0: #{tpu_custom_call.1}
  #allocation0 [shape = 'u32[]', space=smem, size = 0x4, offset = 0x4, fixed_abs, tag = 'smem constant byte address 0x4 - core index']
  #allocation1 [shape = 'u32[72,128]{1,0:T(1,128)}', space=vmem, size = 0x9000, scoped, tag = 'internal scratch']
  #allocation2 [shape = 'f32[384,36]{1,0:T(8,128)}', space=vmem, size = 0x30000, scoped, tag = 'scratch operand']
  %s0 = inlined_call_operand.vmem [shape: bf16[2,326,4], index: 0, kind: input, shape index: {}]
  %s1 = inlined_call_operand.vmem [shape: bf16[36,32], index: 1, kind: input, shape index: {}]
  %s2 = inlined_call_operand.vmem [shape: f32[1,32], index: 2, kind: input, shape index: {}]
  %s3 = inlined_call_operand.vmem [shape: f32[1,1,384], index: 3, kind: input, shape index: {}]
  %s4 = inlined_call_operand.hbm [shape: f32[2,1,32], index: 4, kind: output, shape index: {}]
  %s5 = sld [smem:[#allocation0]]
  $region49: #{tpu_custom_call.1} parent=0
    _
  %s7 = ssub.s32 1, %s5
  %s8 = scalar_select 0, %s7, %s5
  $region1: #{tpu_custom_call.1} parent=0
    #allocation3 [shape = 'u8[1024]{0}', space=vmem, size = 0x400, scoped, tag = 'output window, operand 0']
    #allocation4 [shape = 's32[2]{0}', space=sflag, size = 0x8, scoped, tag = 'scoped memory for tpu_custom_call.1']
    %9 = vsyncpa [#allocation4], 0
    %s10 = scalar_lea.sflag [#allocation4], 1
    %11 = vsyncpa %s10, 0
    loop: start=0, step=1, limit=4
    $region2: #{tpu_custom_call.1} parent=1 // loop_pre_header
      _
    $region3: #{tpu_custom_call.1} parent=1 // loop_header
      %s13 = sphi 0, %s17
      %p14 = scmp.ge.s32.totalorder %s13, 4
      %s23 = sphi 0, %s25
      %s26 = sphi 0, %s23
      %s27 = sphi 0, %s26
      %s43 = sphi 0, %s27
      %s47 = sphi 0, %s47
      %s49 = sphi 0, %s47
      %s50 = sphi 0, %s49
      %s64 = sphi 0, %s50
      %s68 = sphi 0, %s68
      %s70 = sphi 0, %s68
      %s71 = sphi 0, %s70
      %s85 = sphi 0, %s71
      %s89 = sphi 0, %s89
      %s91 = sphi 0, %s89
      %s92 = sphi 0, %s91
      %s106 = sphi 0, %s92
      %s112 = sphi 0, %s114
      %s115 = sphi 0, %s112
      %s116 = sphi 0, %s115
      %s132 = sphi 0, %s116
    $region4: #{tpu_custom_call.1} parent=1 // loop_header_branch
      %16 = sbr.rel (%p14) target = $region8
    $region5: #{tpu_custom_call.1} parent=1 // loop_body
      %s18 = ssub.s32 %s13, 1
      %s19 = ssub.s32 %s13, 2
      %s20 = sadd.s32 %s13, 1
      %s21 = ssub.s32 %s13, %s20
      %p22 = scmp.eq.s32.totalorder %s21, 0
      %s24 = sadd.s32 %s23, 1
      %s25 = scalar_select %p22, %s23, %s24
      %p28 = pneg %p22
      %p29 = scmp.eq.s32.totalorder %s13, 1
      %p30 = por %p28, %p29
      %p31 = scmp.ne.s32.totalorder %s23, %s26
      %p32 = scmp.eq.s32.totalorder %s13, 0
      %p33 = por %p31, %p32
      %p34 = scmp.ne.s32.totalorder %s23, %s26
      %p35 = scmp.eq.s32.totalorder %s18, 1
      %p36 = por %p34, %p35
      %p37 = scmp.ne.s32.totalorder %s26, %s27
      %p38 = scmp.eq.s32.totalorder %s18, 0
      %p39 = por %p37, %p38
      %p40 = scmp.ne.s32.totalorder %s26, %s27
      %p41 = scmp.eq.s32.totalorder %s19, 1
      %p42 = por %p40, %p41
      %p44 = scmp.ne.s32.totalorder %s27, %s43
      %p45 = scmp.eq.s32.totalorder %s19, 0
      %p46 = por %p44, %p45
      %s48 = sadd.s32 %s47, 1
      %p51 = scmp.eq.s32.totalorder %s13, 1
      %p52 = scmp.ne.s32.totalorder %s47, %s49
      %p53 = scmp.eq.s32.totalorder %s13, 0
      %p54 = por %p52, %p53
      %p55 = scmp.ne.s32.totalorder %s47, %s49
      %p56 = scmp.eq.s32.totalorder %s18, 1
      %p57 = por %p55, %p56
      %p58 = scmp.ne.s32.totalorder %s49, %s50
      %p59 = scmp.eq.s32.totalorder %s18, 0
      %p60 = por %p58, %p59
      %p61 = scmp.ne.s32.totalorder %s49, %s50
      %p62 = scmp.eq.s32.totalorder %s19, 1
      %p63 = por %p61, %p62
      %p65 = scmp.ne.s32.totalorder %s50, %s64
      %p66 = scmp.eq.s32.totalorder %s19, 0
      %p67 = por %p65, %p66
      %s69 = sadd.s32 %s68, 1
      %p72 = scmp.eq.s32.totalorder %s13, 1
      %p73 = scmp.ne.s32.totalorder %s68, %s70
      %p74 = scmp.eq.s32.totalorder %s13, 0
      %p75 = por %p73, %p74
      %p76 = scmp.ne.s32.totalorder %s68, %s70
      %p77 = scmp.eq.s32.totalorder %s18, 1
      %p78 = por %p76, %p77
      %p79 = scmp.ne.s32.totalorder %s70, %s71
      %p80 = scmp.eq.s32.totalorder %s18, 0
      %p81 = por %p79, %p80
      %p82 = scmp.ne.s32.totalorder %s70, %s71
      %p83 = scmp.eq.s32.totalorder %s19, 1
      %p84 = por %p82, %p83
      %p86 = scmp.ne.s32.totalorder %s71, %s85
      %p87 = scmp.eq.s32.totalorder %s19, 0
      %p88 = por %p86, %p87
      %s90 = sadd.s32 %s89, 1
      %p93 = scmp.eq.s32.totalorder %s13, 1
      %p94 = scmp.ne.s32.totalorder %s89, %s91
      %p95 = scmp.eq.s32.totalorder %s13, 0
      %p96 = por %p94, %p95
      %p97 = scmp.ne.s32.totalorder %s89, %s91
      %p98 = scmp.eq.s32.totalorder %s18, 1
      %p99 = por %p97, %p98
      %p100 = scmp.ne.s32.totalorder %s91, %s92
      %p101 = scmp.eq.s32.totalorder %s18, 0
      %p102 = por %p100, %p101
      %p103 = scmp.ne.s32.totalorder %s91, %s92
      %p104 = scmp.eq.s32.totalorder %s19, 1
      %p105 = por %p103, %p104
      %p107 = scmp.ne.s32.totalorder %s92, %s106
      %p108 = scmp.eq.s32.totalorder %s19, 0
      %p109 = por %p107, %p108
      %s110 = ssub.s32 %s13, %s20
      %p111 = scmp.eq.s32.totalorder %s110, 0
      %s113 = sadd.s32 %s112, 1
      %s114 = scalar_select %p111, %s112, %s113
      %p117 = pneg %p111
      %p118 = scmp.eq.s32.totalorder %s13, 1
      %p119 = por %p117, %p118
      %p120 = scmp.ne.s32.totalorder %s112, %s115
      %p121 = scmp.eq.s32.totalorder %s13, 0
      %p122 = por %p120, %p121
      %p123 = scmp.ne.s32.totalorder %s112, %s115
      %p124 = scmp.eq.s32.totalorder %s18, 1
      %p125 = por %p123, %p124
      %p126 = scmp.ne.s32.totalorder %s115, %s116
      %p127 = scmp.eq.s32.totalorder %s18, 0
      %p128 = por %p126, %p127
      %p129 = scmp.ne.s32.totalorder %s115, %s116
      %p130 = scmp.eq.s32.totalorder %s19, 1
      %p131 = por %p129, %p130
      %p133 = scmp.ne.s32.totalorder %s116, %s132
      %p134 = scmp.eq.s32.totalorder %s19, 0
      %p135 = por %p133, %p134
      %p136 = scmp.le.s32.totalorder 1, %s13
      %p137 = scmp.lt.s32.totalorder %s13, 3
      %p138 = pnand %p136, %p137
      %p139 = pneg %p138
      // Predicated region
      $region9: #{tpu_custom_call.1} parent=5 // pred_check
        _
      $region10: #{tpu_custom_call.1} parent=5 // pred_check_branch
        %141 = sbr.rel (%p138) target = $region12
      $region11: #{tpu_custom_call.1} parent=5 // pred_region
        %s142 = ssub.s32 %s13, 1
        // Predicated region
        $region13: #{tpu_custom_call.1} parent=11 // pred_check
          %p143 = pneg %p60
        $region14: #{tpu_custom_call.1} parent=11 // pred_check_branch
          %145 = sbr.rel (%p143) target = $region16
        $region15: #{tpu_custom_call.1} parent=11 // pred_region
          _
        $region16: #{tpu_custom_call.1} parent=11 // pred_fallthru
          _
        // Predicated region
        $region17: #{tpu_custom_call.1} parent=11 // pred_check
          %p146 = pneg %p81
        $region18: #{tpu_custom_call.1} parent=11 // pred_check_branch
          %148 = sbr.rel (%p146) target = $region20
        $region19: #{tpu_custom_call.1} parent=11 // pred_region
          _
        $region20: #{tpu_custom_call.1} parent=11 // pred_fallthru
          _
        // Predicated region
        $region21: #{tpu_custom_call.1} parent=11 // pred_check
          %p149 = pneg %p102
        $region22: #{tpu_custom_call.1} parent=11 // pred_check_branch
          %151 = sbr.rel (%p149) target = $region24
        $region23: #{tpu_custom_call.1} parent=11 // pred_region
          _
        $region24: #{tpu_custom_call.1} parent=11 // pred_fallthru
          _
      $region12: #{tpu_custom_call.1} parent=5 // pred_fallthru
        _
      %p152 = scmp.lt.s32.totalorder %s13, 2
      // Predicated region
      $region25: #{tpu_custom_call.1} parent=5 // pred_check
        %p153 = pneg %p152
      $region26: #{tpu_custom_call.1} parent=5 // pred_check_branch
        %155 = sbr.rel (%p153) target = $region28
      $region27: #{tpu_custom_call.1} parent=5 // pred_region
        // Predicated region
        $region29: #{tpu_custom_call.1} parent=27 // pred_check
          %p156 = pneg %p33
        $region30: #{tpu_custom_call.1} parent=27 // pred_check_branch
          %158 = sbr.rel (%p156) target = $region32
        $region31: #{tpu_custom_call.1} parent=27 // pred_region
          %p159 = scmp.lt.s32.totalorder %s13, 1
          %s160 = scalar_select %p159, %s13, 1
          %s161 = smul.addr %s160, 41
          %s162 = smul.addr %s161, 4
          %s163 = scalar_lea.vmem %s0, %s162
        $region32: #{tpu_custom_call.1} parent=27 // pred_fallthru
          _
      $region28: #{tpu_custom_call.1} parent=5 // pred_fallthru
        _
      %p164 = scmp.le.s32.totalorder 1, %s13
      %p165 = scmp.lt.s32.totalorder %s13, 3
      %p166 = pnand %p164, %p165
      %p167 = pneg %p166
      // Predicated region
      $region33: #{tpu_custom_call.1} parent=5 // pred_check
        _
      $region34: #{tpu_custom_call.1} parent=5 // pred_check_branch
        %169 = sbr.rel (%p166) target = $region36
      $region35: #{tpu_custom_call.1} parent=5 // pred_region
        %s170 = ssub.s32 %s13, 1
        %p171 = scmp.lt.s32.totalorder %s18, 1
        %s172 = scalar_select %p171, %s18, 1
        %s173 = smul.addr %s172, 41
        %s174 = smul.addr %s173, 4
        %s175 = scalar_lea.vmem %s0, %s174
        %p176 = pneg %p39
        %p177 = pneg %p36
        %p178 = pneg %p60
        %p179 = pneg %p57
        %p180 = pneg %p81
        %p181 = pneg %p78
        %p182 = pneg %p102
        %p183 = pneg %p99
        %p184 = pneg %p128
        %p185 = pneg %p125
        %s186 = sand.u32 %s115, 1
        %s187 = scalar_lea.sflag [#allocation4], %s186
        %s188 = sand.u32 %s115, 1
        %s189 = scalar_lea.vmem [#allocation3], %s188
        %p190 = scmp.lt.s32.totalorder %s18, 1
        %s191 = scalar_select %p190, %s18, 1
        %s192 = smul.addr %s191, 41
        %s193 = smul.addr %s192, 4
        %s194 = scalar_lea.vmem %s0, %s193
        %vm196 = vcmask 293888
        %197 = vst.msk [vmem:[#allocation2 + $0x120] sm:$0xff] %vm196, 0.0
        %198 = vst.msk [vmem:[#allocation2 + $0x128] sm:$0xff] %vm196, 0.0
        %199 = vst.msk [vmem:[#allocation2 + $0x130] sm:$0xff] %vm196, 0.0
        %200 = vst.msk [vmem:[#allocation2 + $0x138] sm:$0xff] %vm196, 0.0
        %201 = vst.msk [vmem:[#allocation2 + $0x140] sm:$0xff] %vm196, 0.0
        %202 = vst.msk [vmem:[#allocation2 + $0x148] sm:$0xff] %vm196, 0.0
        %203 = vst.msk [vmem:[#allocation2 + $0x150] sm:$0xff] %vm196, 0.0
        %204 = vst.msk [vmem:[#allocation2 + $0x158] sm:$0xff] %vm196, 0.0
        %205 = vst.msk [vmem:[#allocation2 + $0x160] sm:$0xff] %vm196, 0.0
        %206 = vst.msk [vmem:[#allocation2 + $0x168] sm:$0xff] %vm196, 0.0
        %207 = vst.msk [vmem:[#allocation2 + $0x170] sm:$0xff] %vm196, 0.0
        %208 = vst.msk [vmem:[#allocation2 + $0x178] sm:$0xff] %vm196, 0.0
        %v209 = vld [vmem:[%s194] sm:$0xf]
        %v210 = vld [vmem:[%s194 + $0x4] sm:$0xf]
        %v211 = vld [vmem:[%s194 + $0x8] sm:$0xf]
        %v212 = vld [vmem:[%s194 + $0xc] sm:$0xf]
        %v213 = vld [vmem:[%s194 + $0x10] sm:$0xf]
        %v214 = vld [vmem:[%s194 + $0x14] sm:$0xf]
        %v215 = vld [vmem:[%s194 + $0x18] sm:$0xf]
        %v216 = vld [vmem:[%s194 + $0x1c] sm:$0xf]
        %v217 = vld [vmem:[%s194 + $0x20] sm:$0xf]
        %v218 = vld [vmem:[%s194 + $0x24] sm:$0xf]
        %v219 = vld [vmem:[%s194 + $0x28] sm:$0xf]
        %v220 = vld [vmem:[%s194 + $0x2c] sm:$0xf]
        %v221 = vld [vmem:[%s194 + $0x30] sm:$0xf]
        %v222 = vld [vmem:[%s194 + $0x34] sm:$0xf]
        %v223 = vld [vmem:[%s194 + $0x38] sm:$0xf]
        %v224 = vld [vmem:[%s194 + $0x3c] sm:$0xf]
        %v225 = vld [vmem:[%s194 + $0x40] sm:$0xf]
        %v226 = vld [vmem:[%s194 + $0x44] sm:$0xf]
        %v227 = vld [vmem:[%s194 + $0x48] sm:$0xf]
        %v228 = vld [vmem:[%s194 + $0x4c] sm:$0xf]
        %v229 = vld [vmem:[%s194 + $0x50] sm:$0xf]
        %v230 = vld [vmem:[%s194 + $0x54] sm:$0xf]
        %v231 = vld [vmem:[%s194 + $0x58] sm:$0xf]
        %v232 = vld [vmem:[%s194 + $0x5c] sm:$0xf]
        %v233 = vld [vmem:[%s194 + $0x60] sm:$0xf]
        %v234 = vld [vmem:[%s194 + $0x64] sm:$0xf]
        %v235 = vld [vmem:[%s194 + $0x68] sm:$0xf]
        %v236 = vld [vmem:[%s194 + $0x6c] sm:$0xf]
        %v237 = vld [vmem:[%s194 + $0x70] sm:$0xf]
        %v238 = vld [vmem:[%s194 + $0x74] sm:$0xf]
        %v239 = vld [vmem:[%s194 + $0x78] sm:$0xf]
        %v240 = vld [vmem:[%s194 + $0x7c] sm:$0xf]
        %v241 = vld [vmem:[%s194 + $0x80] sm:$0xf]
        %v242 = vld [vmem:[%s194 + $0x84] sm:$0xf]
        %v243 = vld [vmem:[%s194 + $0x88] sm:$0xf]
        %v244 = vld [vmem:[%s194 + $0x8c] sm:$0xf]
        %v245 = vunpack.c.l.bf16 %v209
        %v246 = vunpack.c.l.bf16 %v210
        %v247 = vunpack.c.l.bf16 %v211
        %v248 = vunpack.c.l.bf16 %v212
        %v249 = vunpack.c.l.bf16 %v213
        %v250 = vunpack.c.l.bf16 %v214
        %v251 = vunpack.c.l.bf16 %v215
        %v252 = vunpack.c.l.bf16 %v216
        %v253 = vunpack.c.l.bf16 %v217
        %v254 = vunpack.c.l.bf16 %v218
        %v255 = vunpack.c.l.bf16 %v219
        %v256 = vunpack.c.l.bf16 %v220
        %v257 = vunpack.c.l.bf16 %v221
        %v258 = vunpack.c.l.bf16 %v222
        %v259 = vunpack.c.l.bf16 %v223
        %v260 = vunpack.c.l.bf16 %v224
        %v261 = vunpack.c.l.bf16 %v225
        %v262 = vunpack.c.l.bf16 %v226
        %v263 = vunpack.c.l.bf16 %v227
        %v264 = vunpack.c.l.bf16 %v228
        %v265 = vunpack.c.l.bf16 %v229
        %v266 = vunpack.c.l.bf16 %v230
        %v267 = vunpack.c.l.bf16 %v231
        %v268 = vunpack.c.l.bf16 %v232
        %v269 = vunpack.c.l.bf16 %v233
        %v270 = vunpack.c.l.bf16 %v234
        %v271 = vunpack.c.l.bf16 %v235
        %v272 = vunpack.c.l.bf16 %v236
        %v273 = vunpack.c.l.bf16 %v237
        %v274 = vunpack.c.l.bf16 %v238
        %v275 = vunpack.c.l.bf16 %v239
        %v276 = vunpack.c.l.bf16 %v240
        %v277 = vunpack.c.l.bf16 %v241
        %v278 = vunpack.c.l.bf16 %v242
        %v279 = vunpack.c.l.bf16 %v243
        %v280 = vunpack.c.l.bf16 %v244
        %vm281 = vcmask 31744
        %282 = vst.msk [vmem:[#allocation2] sm:$0xff] %vm281, %v245
        %283 = vst.msk [vmem:[#allocation2 + $0x8] sm:$0xff] %vm281, %v246
        %284 = vst.msk [vmem:[#allocation2 + $0x10] sm:$0xff] %vm281, %v247
        %285 = vst.msk [vmem:[#allocation2 + $0x18] sm:$0xff] %vm281, %v248
        %286 = vst.msk [vmem:[#allocation2 + $0x20] sm:$0xff] %vm281, %v249
        %287 = vst.msk [vmem:[#allocation2 + $0x28] sm:$0xff] %vm281, %v250
        %288 = vst.msk [vmem:[#allocation2 + $0x30] sm:$0xff] %vm281, %v251
        %289 = vst.msk [vmem:[#allocation2 + $0x38] sm:$0xff] %vm281, %v252
        %290 = vst.msk [vmem:[#allocation2 + $0x40] sm:$0xff] %vm281, %v253
        %291 = vst.msk [vmem:[#allocation2 + $0x48] sm:$0xff] %vm281, %v254
        %292 = vst.msk [vmem:[#allocation2 + $0x50] sm:$0xff] %vm281, %v255
        %293 = vst.msk [vmem:[#allocation2 + $0x58] sm:$0xff] %vm281, %v256
        %294 = vst.msk [vmem:[#allocation2 + $0x60] sm:$0xff] %vm281, %v257
        %295 = vst.msk [vmem:[#allocation2 + $0x68] sm:$0xff] %vm281, %v258
        %296 = vst.msk [vmem:[#allocation2 + $0x70] sm:$0xff] %vm281, %v259
        %297 = vst.msk [vmem:[#allocation2 + $0x78] sm:$0xff] %vm281, %v260
        %298 = vst.msk [vmem:[#allocation2 + $0x80] sm:$0xff] %vm281, %v261
        %299 = vst.msk [vmem:[#allocation2 + $0x88] sm:$0xff] %vm281, %v262
        %300 = vst.msk [vmem:[#allocation2 + $0x90] sm:$0xff] %vm281, %v263
        %301 = vst.msk [vmem:[#allocation2 + $0x98] sm:$0xff] %vm281, %v264
        %302 = vst.msk [vmem:[#allocation2 + $0xa0] sm:$0xff] %vm281, %v265
        %303 = vst.msk [vmem:[#allocation2 + $0xa8] sm:$0xff] %vm281, %v266
        %304 = vst.msk [vmem:[#allocation2 + $0xb0] sm:$0xff] %vm281, %v267
        %305 = vst.msk [vmem:[#allocation2 + $0xb8] sm:$0xff] %vm281, %v268
        %306 = vst.msk [vmem:[#allocation2 + $0xc0] sm:$0xff] %vm281, %v269
        %307 = vst.msk [vmem:[#allocation2 + $0xc8] sm:$0xff] %vm281, %v270
        %308 = vst.msk [vmem:[#allocation2 + $0xd0] sm:$0xff] %vm281, %v271
        %309 = vst.msk [vmem:[#allocation2 + $0xd8] sm:$0xff] %vm281, %v272
        %310 = vst.msk [vmem:[#allocation2 + $0xe0] sm:$0xff] %vm281, %v273
        %311 = vst.msk [vmem:[#allocation2 + $0xe8] sm:$0xff] %vm281, %v274
        %312 = vst.msk [vmem:[#allocation2 + $0xf0] sm:$0xff] %vm281, %v275
        %313 = vst.msk [vmem:[#allocation2 + $0xf8] sm:$0xff] %vm281, %v276
        %314 = vst.msk [vmem:[#allocation2 + $0x100] sm:$0xff] %vm281, %v277
        %315 = vst.msk [vmem:[#allocation2 + $0x108] sm:$0xff] %vm281, %v278
        %316 = vst.msk [vmem:[#allocation2 + $0x110] sm:$0xff] %vm281, %v279
        %317 = vst.msk [vmem:[#allocation2 + $0x118] sm:$0xff] %vm281, %v280
        %v318 = vld [vmem:[%s194] sm:$0xf]
        %v319 = vld [vmem:[%s194 + $0x4] sm:$0xf]
        %v320 = vld [vmem:[%s194 + $0x8] sm:$0xf]
        %v321 = vld [vmem:[%s194 + $0xc] sm:$0xf]
        %v322 = vld [vmem:[%s194 + $0x10] sm:$0xf]
        %v323 = vld [vmem:[%s194 + $0x14] sm:$0xf]
        %v324 = vld [vmem:[%s194 + $0x18] sm:$0xf]
        %v325 = vld [vmem:[%s194 + $0x1c] sm:$0xf]
        %v326 = vld [vmem:[%s194 + $0x20] sm:$0xf]
        %v327 = vld [vmem:[%s194 + $0x24] sm:$0xf]
        %v328 = vld [vmem:[%s194 + $0x28] sm:$0xf]
        %v329 = vld [vmem:[%s194 + $0x2c] sm:$0xf]
        %v330 = vld [vmem:[%s194 + $0x30] sm:$0xf]
        %v331 = vld [vmem:[%s194 + $0x34] sm:$0xf]
        %v332 = vld [vmem:[%s194 + $0x38] sm:$0xf]
        %v333 = vld [vmem:[%s194 + $0x3c] sm:$0xf]
        %v334 = vld [vmem:[%s194 + $0x40] sm:$0xf]
        %v335 = vld [vmem:[%s194 + $0x44] sm:$0xf]
        %v336 = vld [vmem:[%s194 + $0x48] sm:$0xf]
        %v337 = vld [vmem:[%s194 + $0x4c] sm:$0xf]
        %v338 = vld [vmem:[%s194 + $0x50] sm:$0xf]
        %v339 = vld [vmem:[%s194 + $0x54] sm:$0xf]
        %v340 = vld [vmem:[%s194 + $0x58] sm:$0xf]
        %v341 = vld [vmem:[%s194 + $0x5c] sm:$0xf]
        %v342 = vld [vmem:[%s194 + $0x60] sm:$0xf]
        %v343 = vld [vmem:[%s194 + $0x64] sm:$0xf]
        %v344 = vld [vmem:[%s194 + $0x68] sm:$0xf]
        %v345 = vld [vmem:[%s194 + $0x6c] sm:$0xf]
        %v346 = vld [vmem:[%s194 + $0x70] sm:$0xf]
        %v347 = vld [vmem:[%s194 + $0x74] sm:$0xf]
        %v348 = vld [vmem:[%s194 + $0x78] sm:$0xf]
        %v349 = vld [vmem:[%s194 + $0x7c] sm:$0xf]
        %v350 = vld [vmem:[%s194 + $0x80] sm:$0xf]
        %v351 = vld [vmem:[%s194 + $0x84] sm:$0xf]
        %v352 = vld [vmem:[%s194 + $0x88] sm:$0xf]
        %v353 = vld [vmem:[%s194 + $0x8c] sm:$0xf]
        %v354 = vld [vmem:[%s194 + $0x90] sm:$0x1]
        %v355 = vunpack.c.l.bf16 %v318
        %v356 = vunpack.c.l.bf16 %v319
        %v357 = vunpack.c.l.bf16 %v320
        %v358 = vunpack.c.l.bf16 %v321
        %v359 = vunpack.c.l.bf16 %v322
        %v360 = vunpack.c.l.bf16 %v323
        %v361 = vunpack.c.l.bf16 %v324
        %v362 = vunpack.c.l.bf16 %v325
        %v363 = vunpack.c.l.bf16 %v326
        %v364 = vunpack.c.l.bf16 %v327
        %v365 = vunpack.c.l.bf16 %v328
        %v366 = vunpack.c.l.bf16 %v329
        %v367 = vunpack.c.l.bf16 %v330
        %v368 = vunpack.c.l.bf16 %v331
        %v369 = vunpack.c.l.bf16 %v332
        %v370 = vunpack.c.l.bf16 %v333
        %v371 = vunpack.c.l.bf16 %v334
        %v372 = vunpack.c.l.bf16 %v335
        %v373 = vunpack.c.l.bf16 %v336
        %v374 = vunpack.c.l.bf16 %v337
        %v375 = vunpack.c.l.bf16 %v338
        %v376 = vunpack.c.l.bf16 %v339
        %v377 = vunpack.c.l.bf16 %v340
        %v378 = vunpack.c.l.bf16 %v341
        %v379 = vunpack.c.l.bf16 %v342
        %v380 = vunpack.c.l.bf16 %v343
        %v381 = vunpack.c.l.bf16 %v344
        %v382 = vunpack.c.l.bf16 %v345
        %v383 = vunpack.c.l.bf16 %v346
        %v384 = vunpack.c.l.bf16 %v347
        %v385 = vunpack.c.l.bf16 %v348
        %v386 = vunpack.c.l.bf16 %v349
        %v387 = vunpack.c.l.bf16 %v350
        %v388 = vunpack.c.l.bf16 %v351
        %v389 = vunpack.c.l.bf16 %v352
        %v390 = vunpack.c.l.bf16 %v353
        %v391 = vunpack.c.l.bf16 %v354
        %429 = vrot.lane.b32.xlu0 %v355, 4
        %v430 = vpop.permute.xlu0 %429
        %431 = vrot.lane.b32.xlu0 %v356, 4
        %v432 = vpop.permute.xlu0 %431
        %433 = vrot.lane.b32.xlu0 %v357, 4
        %v434 = vpop.permute.xlu0 %433
        %435 = vrot.lane.b32.xlu0 %v358, 4
        %v436 = vpop.permute.xlu0 %435
        %437 = vrot.lane.b32.xlu0 %v359, 4
        %v438 = vpop.permute.xlu0 %437
        %439 = vrot.lane.b32.xlu0 %v360, 4
        %v440 = vpop.permute.xlu0 %439
        %441 = vrot.lane.b32.xlu0 %v361, 4
        %v442 = vpop.permute.xlu0 %441
        %443 = vrot.lane.b32.xlu0 %v362, 4
        %v444 = vpop.permute.xlu0 %443
        %445 = vrot.lane.b32.xlu0 %v363, 4
        %v446 = vpop.permute.xlu0 %445
        %447 = vrot.lane.b32.xlu0 %v364, 4
        %v448 = vpop.permute.xlu0 %447
        %449 = vrot.lane.b32.xlu0 %v365, 4
        %v450 = vpop.permute.xlu0 %449
        %451 = vrot.lane.b32.xlu0 %v366, 4
        %v452 = vpop.permute.xlu0 %451
        %453 = vrot.lane.b32.xlu0 %v367, 4
        %v454 = vpop.permute.xlu0 %453
        %455 = vrot.lane.b32.xlu0 %v368, 4
        %v456 = vpop.permute.xlu0 %455
        %457 = vrot.lane.b32.xlu0 %v369, 4
        %v458 = vpop.permute.xlu0 %457
        %459 = vrot.lane.b32.xlu0 %v370, 4
        %v460 = vpop.permute.xlu0 %459
        %461 = vrot.lane.b32.xlu0 %v371, 4
        %v462 = vpop.permute.xlu0 %461
        %463 = vrot.lane.b32.xlu0 %v372, 4
        %v464 = vpop.permute.xlu0 %463
        %465 = vrot.lane.b32.xlu0 %v373, 4
        %v466 = vpop.permute.xlu0 %465
        %467 = vrot.lane.b32.xlu0 %v374, 4
        %v468 = vpop.permute.xlu0 %467
        %469 = vrot.lane.b32.xlu0 %v375, 4
        %v470 = vpop.permute.xlu0 %469
        %471 = vrot.lane.b32.xlu0 %v376, 4
        %v472 = vpop.permute.xlu0 %471
        %473 = vrot.lane.b32.xlu0 %v377, 4
        %v474 = vpop.permute.xlu0 %473
        %475 = vrot.lane.b32.xlu0 %v378, 4
        %v476 = vpop.permute.xlu0 %475
        %477 = vrot.lane.b32.xlu0 %v379, 4
        %v478 = vpop.permute.xlu0 %477
        %479 = vrot.lane.b32.xlu0 %v380, 4
        %v480 = vpop.permute.xlu0 %479
        %481 = vrot.lane.b32.xlu0 %v381, 4
        %v482 = vpop.permute.xlu0 %481
        %483 = vrot.lane.b32.xlu0 %v382, 4
        %v484 = vpop.permute.xlu0 %483
        %485 = vrot.lane.b32.xlu0 %v383, 4
        %v486 = vpop.permute.xlu0 %485
        %487 = vrot.lane.b32.xlu0 %v384, 4
        %v488 = vpop.permute.xlu0 %487
        %489 = vrot.lane.b32.xlu0 %v385, 4
        %v490 = vpop.permute.xlu0 %489
        %491 = vrot.lane.b32.xlu0 %v386, 4
        %v492 = vpop.permute.xlu0 %491
        %493 = vrot.lane.b32.xlu0 %v387, 4
        %v494 = vpop.permute.xlu0 %493
        %495 = vrot.lane.b32.xlu0 %v388, 4
        %v496 = vpop.permute.xlu0 %495
        %497 = vrot.lane.b32.xlu0 %v389, 4
        %v498 = vpop.permute.xlu0 %497
        %499 = vrot.lane.b32.xlu0 %v390, 4
        %v500 = vpop.permute.xlu0 %499
        %501 = vrot.lane.b32.xlu0 %v391, 4
        %v502 = vpop.permute.xlu0 %501
        %vm540 = vcmask 64545
        %541 = vst.msk [vmem:[#allocation2 - $0x1] sm:$0xfe] %vm540, %v430
        %vm542 = vcmask 64544
        %543 = vst.msk [vmem:[#allocation2 + $0x7] sm:$0xff] %vm542, %v432
        %544 = vst.msk [vmem:[#allocation2 + $0xf] sm:$0xff] %vm542, %v434
        %545 = vst.msk [vmem:[#allocation2 + $0x17] sm:$0xff] %vm542, %v436
        %546 = vst.msk [vmem:[#allocation2 + $0x1f] sm:$0xff] %vm542, %v438
        %547 = vst.msk [vmem:[#allocation2 + $0x27] sm:$0xff] %vm542, %v440
        %548 = vst.msk [vmem:[#allocation2 + $0x2f] sm:$0xff] %vm542, %v442
        %549 = vst.msk [vmem:[#allocation2 + $0x37] sm:$0xff] %vm542, %v444
        %550 = vst.msk [vmem:[#allocation2 + $0x3f] sm:$0xff] %vm542, %v446
        %551 = vst.msk [vmem:[#allocation2 + $0x47] sm:$0xff] %vm542, %v448
        %552 = vst.msk [vmem:[#allocation2 + $0x4f] sm:$0xff] %vm542, %v450
        %553 = vst.msk [vmem:[#allocation2 + $0x57] sm:$0xff] %vm542, %v452
        %554 = vst.msk [vmem:[#allocation2 + $0x5f] sm:$0xff] %vm542, %v454
        %555 = vst.msk [vmem:[#allocation2 + $0x67] sm:$0xff] %vm542, %v456
        %556 = vst.msk [vmem:[#allocation2 + $0x6f] sm:$0xff] %vm542, %v458
        %557 = vst.msk [vmem:[#allocation2 + $0x77] sm:$0xff] %vm542, %v460
        %558 = vst.msk [vmem:[#allocation2 + $0x7f] sm:$0xff] %vm542, %v462
        %559 = vst.msk [vmem:[#allocation2 + $0x87] sm:$0xff] %vm542, %v464
        %560 = vst.msk [vmem:[#allocation2 + $0x8f] sm:$0xff] %vm542, %v466
        %561 = vst.msk [vmem:[#allocation2 + $0x97] sm:$0xff] %vm542, %v468
        %562 = vst.msk [vmem:[#allocation2 + $0x9f] sm:$0xff] %vm542, %v470
        %563 = vst.msk [vmem:[#allocation2 + $0xa7] sm:$0xff] %vm542, %v472
        %564 = vst.msk [vmem:[#allocation2 + $0xaf] sm:$0xff] %vm542, %v474
        %565 = vst.msk [vmem:[#allocation2 + $0xb7] sm:$0xff] %vm542, %v476
        %566 = vst.msk [vmem:[#allocation2 + $0xbf] sm:$0xff] %vm542, %v478
        %567 = vst.msk [vmem:[#allocation2 + $0xc7] sm:$0xff] %vm542, %v480
        %568 = vst.msk [vmem:[#allocation2 + $0xcf] sm:$0xff] %vm542, %v482
        %569 = vst.msk [vmem:[#allocation2 + $0xd7] sm:$0xff] %vm542, %v484
        %570 = vst.msk [vmem:[#allocation2 + $0xdf] sm:$0xff] %vm542, %v486
        %571 = vst.msk [vmem:[#allocation2 + $0xe7] sm:$0xff] %vm542, %v488
        %572 = vst.msk [vmem:[#allocation2 + $0xef] sm:$0xff] %vm542, %v490
        %573 = vst.msk [vmem:[#allocation2 + $0xf7] sm:$0xff] %vm542, %v492
        %574 = vst.msk [vmem:[#allocation2 + $0xff] sm:$0xff] %vm542, %v494
        %575 = vst.msk [vmem:[#allocation2 + $0x107] sm:$0xff] %vm542, %v496
        %576 = vst.msk [vmem:[#allocation2 + $0x10f] sm:$0xff] %vm542, %v498
        %577 = vst.msk [vmem:[#allocation2 + $0x117] sm:$0xff] %vm542, %v500
        %vm578 = vcmask 57376
        %579 = vst.msk [vmem:[#allocation2 + $0x11f] sm:$0x1] %vm578, %v502
        %v580 = vld [vmem:[%s194] sm:$0xe]
        %v581 = vld [vmem:[%s194 + $0x4] sm:$0xf]
        %v582 = vld [vmem:[%s194 + $0x8] sm:$0xf]
        %v583 = vld [vmem:[%s194 + $0xc] sm:$0xf]
        %v584 = vld [vmem:[%s194 + $0x10] sm:$0xf]
        %v585 = vld [vmem:[%s194 + $0x14] sm:$0xf]
        %v586 = vld [vmem:[%s194 + $0x18] sm:$0xf]
        %v587 = vld [vmem:[%s194 + $0x1c] sm:$0xf]
        %v588 = vld [vmem:[%s194 + $0x20] sm:$0xf]
        %v589 = vld [vmem:[%s194 + $0x24] sm:$0xf]
        %v590 = vld [vmem:[%s194 + $0x28] sm:$0xf]
        %v591 = vld [vmem:[%s194 + $0x2c] sm:$0xf]
        %v592 = vld [vmem:[%s194 + $0x30] sm:$0xf]
        %v593 = vld [vmem:[%s194 + $0x34] sm:$0xf]
        %v594 = vld [vmem:[%s194 + $0x38] sm:$0xf]
        %v595 = vld [vmem:[%s194 + $0x3c] sm:$0xf]
        %v596 = vld [vmem:[%s194 + $0x40] sm:$0xf]
        %v597 = vld [vmem:[%s194 + $0x44] sm:$0xf]
        %v598 = vld [vmem:[%s194 + $0x48] sm:$0xf]
        %v599 = vld [vmem:[%s194 + $0x4c] sm:$0xf]
        %v600 = vld [vmem:[%s194 + $0x50] sm:$0xf]
        %v601 = vld [vmem:[%s194 + $0x54] sm:$0xf]
        %v602 = vld [vmem:[%s194 + $0x58] sm:$0xf]
        %v603 = vld [vmem:[%s194 + $0x5c] sm:$0xf]
        %v604 = vld [vmem:[%s194 + $0x60] sm:$0xf]
        %v605 = vld [vmem:[%s194 + $0x64] sm:$0xf]
        %v606 = vld [vmem:[%s194 + $0x68] sm:$0xf]
        %v607 = vld [vmem:[%s194 + $0x6c] sm:$0xf]
        %v608 = vld [vmem:[%s194 + $0x70] sm:$0xf]
        %v609 = vld [vmem:[%s194 + $0x74] sm:$0xf]
        %v610 = vld [vmem:[%s194 + $0x78] sm:$0xf]
        %v611 = vld [vmem:[%s194 + $0x7c] sm:$0xf]
        %v612 = vld [vmem:[%s194 + $0x80] sm:$0xf]
        %v613 = vld [vmem:[%s194 + $0x84] sm:$0xf]
        %v614 = vld [vmem:[%s194 + $0x88] sm:$0xf]
        %v615 = vld [vmem:[%s194 + $0x8c] sm:$0xf]
        %v616 = vld [vmem:[%s194 + $0x90] sm:$0x1]
        %v617 = vunpack.c.l.bf16 %v580
        %v618 = vunpack.c.l.bf16 %v581
        %v619 = vunpack.c.l.bf16 %v582
        %v620 = vunpack.c.l.bf16 %v583
        %v621 = vunpack.c.l.bf16 %v584
        %v622 = vunpack.c.l.bf16 %v585
        %v623 = vunpack.c.l.bf16 %v586
        %v624 = vunpack.c.l.bf16 %v587
        %v625 = vunpack.c.l.bf16 %v588
        %v626 = vunpack.c.l.bf16 %v589
        %v627 = vunpack.c.l.bf16 %v590
        %v628 = vunpack.c.l.bf16 %v591
        %v629 = vunpack.c.l.bf16 %v592
        %v630 = vunpack.c.l.bf16 %v593
        %v631 = vunpack.c.l.bf16 %v594
        %v632 = vunpack.c.l.bf16 %v595
        %v633 = vunpack.c.l.bf16 %v596
        %v634 = vunpack.c.l.bf16 %v597
        %v635 = vunpack.c.l.bf16 %v598
        %v636 = vunpack.c.l.bf16 %v599
        %v637 = vunpack.c.l.bf16 %v600
        %v638 = vunpack.c.l.bf16 %v601
        %v639 = vunpack.c.l.bf16 %v602
        %v640 = vunpack.c.l.bf16 %v603
        %v641 = vunpack.c.l.bf16 %v604
        %v642 = vunpack.c.l.bf16 %v605
        %v643 = vunpack.c.l.bf16 %v606
        %v644 = vunpack.c.l.bf16 %v607
        %v645 = vunpack.c.l.bf16 %v608
        %v646 = vunpack.c.l.bf16 %v609
        %v647 = vunpack.c.l.bf16 %v610
        %v648 = vunpack.c.l.bf16 %v611
        %v649 = vunpack.c.l.bf16 %v612
        %v650 = vunpack.c.l.bf16 %v613
        %v651 = vunpack.c.l.bf16 %v614
        %v652 = vunpack.c.l.bf16 %v615
        %v653 = vunpack.c.l.bf16 %v616
        %691 = vrot.lane.b32.xlu0 %v617, 8
        %v692 = vpop.permute.xlu0 %691
        %693 = vrot.lane.b32.xlu0 %v618, 8
        %v694 = vpop.permute.xlu0 %693
        %695 = vrot.lane.b32.xlu0 %v619, 8
        %v696 = vpop.permute.xlu0 %695
        %697 = vrot.lane.b32.xlu0 %v620, 8
        %v698 = vpop.permute.xlu0 %697
        %699 = vrot.lane.b32.xlu0 %v621, 8
        %v700 = vpop.permute.xlu0 %699
        %701 = vrot.lane.b32.xlu0 %v622, 8
        %v702 = vpop.permute.xlu0 %701
        %703 = vrot.lane.b32.xlu0 %v623, 8
        %v704 = vpop.permute.xlu0 %703
        %705 = vrot.lane.b32.xlu0 %v624, 8
        %v706 = vpop.permute.xlu0 %705
        %707 = vrot.lane.b32.xlu0 %v625, 8
        %v708 = vpop.permute.xlu0 %707
        %709 = vrot.lane.b32.xlu0 %v626, 8
        %v710 = vpop.permute.xlu0 %709
        %711 = vrot.lane.b32.xlu0 %v627, 8
        %v712 = vpop.permute.xlu0 %711
        %713 = vrot.lane.b32.xlu0 %v628, 8
        %v714 = vpop.permute.xlu0 %713
        %715 = vrot.lane.b32.xlu0 %v629, 8
        %v716 = vpop.permute.xlu0 %715
        %717 = vrot.lane.b32.xlu0 %v630, 8
        %v718 = vpop.permute.xlu0 %717
        %719 = vrot.lane.b32.xlu0 %v631, 8
        %v720 = vpop.permute.xlu0 %719
        %721 = vrot.lane.b32.xlu0 %v632, 8
        %v722 = vpop.permute.xlu0 %721
        %723 = vrot.lane.b32.xlu0 %v633, 8
        %v724 = vpop.permute.xlu0 %723
        %725 = vrot.lane.b32.xlu0 %v634, 8
        %v726 = vpop.permute.xlu0 %725
        %727 = vrot.lane.b32.xlu0 %v635, 8
        %v728 = vpop.permute.xlu0 %727
        %729 = vrot.lane.b32.xlu0 %v636, 8
        %v730 = vpop.permute.xlu0 %729
        %731 = vrot.lane.b32.xlu0 %v637, 8
        %v732 = vpop.permute.xlu0 %731
        %733 = vrot.lane.b32.xlu0 %v638, 8
        %v734 = vpop.permute.xlu0 %733
        %735 = vrot.lane.b32.xlu0 %v639, 8
        %v736 = vpop.permute.xlu0 %735
        %737 = vrot.lane.b32.xlu0 %v640, 8
        %v738 = vpop.permute.xlu0 %737
        %739 = vrot.lane.b32.xlu0 %v641, 8
        %v740 = vpop.permute.xlu0 %739
        %741 = vrot.lane.b32.xlu0 %v642, 8
        %v742 = vpop.permute.xlu0 %741
        %743 = vrot.lane.b32.xlu0 %v643, 8
        %v744 = vpop.permute.xlu0 %743
        %745 = vrot.lane.b32.xlu0 %v644, 8
        %v746 = vpop.permute.xlu0 %745
        %747 = vrot.lane.b32.xlu0 %v645, 8
        %v748 = vpop.permute.xlu0 %747
        %749 = vrot.lane.b32.xlu0 %v646, 8
        %v750 = vpop.permute.xlu0 %749
        %751 = vrot.lane.b32.xlu0 %v647, 8
        %v752 = vpop.permute.xlu0 %751
        %753 = vrot.lane.b32.xlu0 %v648, 8
        %v754 = vpop.permute.xlu0 %753
        %755 = vrot.lane.b32.xlu0 %v649, 8
        %v756 = vpop.permute.xlu0 %755
        %757 = vrot.lane.b32.xlu0 %v650, 8
        %v758 = vpop.permute.xlu0 %757
        %759 = vrot.lane.b32.xlu0 %v651, 8
        %v760 = vpop.permute.xlu0 %759
        %761 = vrot.lane.b32.xlu0 %v652, 8
        %v762 = vpop.permute.xlu0 %761
        %763 = vrot.lane.b32.xlu0 %v653, 8
        %v764 = vpop.permute.xlu0 %763
        %vm802 = vcmask 97346
        %803 = vst.msk [vmem:[#allocation2 - $0x2] sm:$0xfc] %vm802, %v692
        %vm804 = vcmask 97344
        %805 = vst.msk [vmem:[#allocation2 + $0x6] sm:$0xff] %vm804, %v694
        %806 = vst.msk [vmem:[#allocation2 + $0xe] sm:$0xff] %vm804, %v696
        %807 = vst.msk [vmem:[#allocation2 + $0x16] sm:$0xff] %vm804, %v698
        %808 = vst.msk [vmem:[#allocation2 + $0x1e] sm:$0xff] %vm804, %v700
        %809 = vst.msk [vmem:[#allocation2 + $0x26] sm:$0xff] %vm804, %v702
        %810 = vst.msk [vmem:[#allocation2 + $0x2e] sm:$0xff] %vm804, %v704
        %811 = vst.msk [vmem:[#allocation2 + $0x36] sm:$0xff] %vm804, %v706
        %812 = vst.msk [vmem:[#allocation2 + $0x3e] sm:$0xff] %vm804, %v708
        %813 = vst.msk [vmem:[#allocation2 + $0x46] sm:$0xff] %vm804, %v710
        %814 = vst.msk [vmem:[#allocation2 + $0x4e] sm:$0xff] %vm804, %v712
        %815 = vst.msk [vmem:[#allocation2 + $0x56] sm:$0xff] %vm804, %v714
        %816 = vst.msk [vmem:[#allocation2 + $0x5e] sm:$0xff] %vm804, %v716
        %817 = vst.msk [vmem:[#allocation2 + $0x66] sm:$0xff] %vm804, %v718
        %818 = vst.msk [vmem:[#allocation2 + $0x6e] sm:$0xff] %vm804, %v720
        %819 = vst.msk [vmem:[#allocation2 + $0x76] sm:$0xff] %vm804, %v722
        %820 = vst.msk [vmem:[#allocation2 + $0x7e] sm:$0xff] %vm804, %v724
        %821 = vst.msk [vmem:[#allocation2 + $0x86] sm:$0xff] %vm804, %v726
        %822 = vst.msk [vmem:[#allocation2 + $0x8e] sm:$0xff] %vm804, %v728
        %823 = vst.msk [vmem:[#allocation2 + $0x96] sm:$0xff] %vm804, %v730
        %824 = vst.msk [vmem:[#allocation2 + $0x9e] sm:$0xff] %vm804, %v732
        %825 = vst.msk [vmem:[#allocation2 + $0xa6] sm:$0xff] %vm804, %v734
        %826 = vst.msk [vmem:[#allocation2 + $0xae] sm:$0xff] %vm804, %v736
        %827 = vst.msk [vmem:[#allocation2 + $0xb6] sm:$0xff] %vm804, %v738
        %828 = vst.msk [vmem:[#allocation2 + $0xbe] sm:$0xff] %vm804, %v740
        %829 = vst.msk [vmem:[#allocation2 + $0xc6] sm:$0xff] %vm804, %v742
        %830 = vst.msk [vmem:[#allocation2 + $0xce] sm:$0xff] %vm804, %v744
        %831 = vst.msk [vmem:[#allocation2 + $0xd6] sm:$0xff] %vm804, %v746
        %832 = vst.msk [vmem:[#allocation2 + $0xde] sm:$0xff] %vm804, %v748
        %833 = vst.msk [vmem:[#allocation2 + $0xe6] sm:$0xff] %vm804, %v750
        %834 = vst.msk [vmem:[#allocation2 + $0xee] sm:$0xff] %vm804, %v752
        %835 = vst.msk [vmem:[#allocation2 + $0xf6] sm:$0xff] %vm804, %v754
        %836 = vst.msk [vmem:[#allocation2 + $0xfe] sm:$0xff] %vm804, %v756
        %837 = vst.msk [vmem:[#allocation2 + $0x106] sm:$0xff] %vm804, %v758
        %838 = vst.msk [vmem:[#allocation2 + $0x10e] sm:$0xff] %vm804, %v760
        %839 = vst.msk [vmem:[#allocation2 + $0x116] sm:$0xff] %vm804, %v762
        %vm840 = vcmask 91200
        %841 = vst.msk [vmem:[#allocation2 + $0x11e] sm:$0x3] %vm840, %v764
        %v842 = vld [vmem:[%s194 + $0x8] sm:$0xe]
        %v843 = vld [vmem:[%s194 + $0xc] sm:$0xf]
        %v844 = vld [vmem:[%s194 + $0x10] sm:$0xf]
        %v845 = vld [vmem:[%s194 + $0x14] sm:$0xf]
        %v846 = vld [vmem:[%s194 + $0x18] sm:$0xf]
        %v847 = vld [vmem:[%s194 + $0x1c] sm:$0xf]
        %v848 = vld [vmem:[%s194 + $0x20] sm:$0xf]
        %v849 = vld [vmem:[%s194 + $0x24] sm:$0xf]
        %v850 = vld [vmem:[%s194 + $0x28] sm:$0xf]
        %v851 = vld [vmem:[%s194 + $0x2c] sm:$0xf]
        %v852 = vld [vmem:[%s194 + $0x30] sm:$0xf]
        %v853 = vld [vmem:[%s194 + $0x34] sm:$0xf]
        %v854 = vld [vmem:[%s194 + $0x38] sm:$0xf]
        %v855 = vld [vmem:[%s194 + $0x3c] sm:$0xf]
        %v856 = vld [vmem:[%s194 + $0x40] sm:$0xf]
        %v857 = vld [vmem:[%s194 + $0x44] sm:$0xf]
        %v858 = vld [vmem:[%s194 + $0x48] sm:$0xf]
        %v859 = vld [vmem:[%s194 + $0x4c] sm:$0xf]
        %v860 = vld [vmem:[%s194 + $0x50] sm:$0xf]
        %v861 = vld [vmem:[%s194 + $0x54] sm:$0xf]
        %v862 = vld [vmem:[%s194 + $0x58] sm:$0xf]
        %v863 = vld [vmem:[%s194 + $0x5c] sm:$0xf]
        %v864 = vld [vmem:[%s194 + $0x60] sm:$0xf]
        %v865 = vld [vmem:[%s194 + $0x64] sm:$0xf]
        %v866 = vld [vmem:[%s194 + $0x68] sm:$0xf]
        %v867 = vld [vmem:[%s194 + $0x6c] sm:$0xf]
        %v868 = vld [vmem:[%s194 + $0x70] sm:$0xf]
        %v869 = vld [vmem:[%s194 + $0x74] sm:$0xf]
        %v870 = vld [vmem:[%s194 + $0x78] sm:$0xf]
        %v871 = vld [vmem:[%s194 + $0x7c] sm:$0xf]
        %v872 = vld [vmem:[%s194 + $0x80] sm:$0xf]
        %v873 = vld [vmem:[%s194 + $0x84] sm:$0xf]
        %v874 = vld [vmem:[%s194 + $0x88] sm:$0xf]
        %v875 = vld [vmem:[%s194 + $0x8c] sm:$0xf]
        %v876 = vld [vmem:[%s194 + $0x90] sm:$0xf]
        %v877 = vld [vmem:[%s194 + $0x94] sm:$0xf]
        %v878 = vld [vmem:[%s194 + $0x98] sm:$0x1]
        %v879 = vunpack.c.l.bf16 %v842
        %v880 = vunpack.c.l.bf16 %v843
        %v881 = vunpack.c.l.bf16 %v844
        %v882 = vunpack.c.l.bf16 %v845
        %v883 = vunpack.c.l.bf16 %v846
        %v884 = vunpack.c.l.bf16 %v847
        %v885 = vunpack.c.l.bf16 %v848
        %v886 = vunpack.c.l.bf16 %v849
        %v887 = vunpack.c.l.bf16 %v850
        %v888 = vunpack.c.l.bf16 %v851
        %v889 = vunpack.c.l.bf16 %v852
        %v890 = vunpack.c.l.bf16 %v853
        %v891 = vunpack.c.l.bf16 %v854
        %v892 = vunpack.c.l.bf16 %v855
        %v893 = vunpack.c.l.bf16 %v856
        %v894 = vunpack.c.l.bf16 %v857
        %v895 = vunpack.c.l.bf16 %v858
        %v896 = vunpack.c.l.bf16 %v859
        %v897 = vunpack.c.l.bf16 %v860
        %v898 = vunpack.c.l.bf16 %v861
        %v899 = vunpack.c.l.bf16 %v862
        %v900 = vunpack.c.l.bf16 %v863
        %v901 = vunpack.c.l.bf16 %v864
        %v902 = vunpack.c.l.bf16 %v865
        %v903 = vunpack.c.l.bf16 %v866
        %v904 = vunpack.c.l.bf16 %v867
        %v905 = vunpack.c.l.bf16 %v868
        %v906 = vunpack.c.l.bf16 %v869
        %v907 = vunpack.c.l.bf16 %v870
        %v908 = vunpack.c.l.bf16 %v871
        %v909 = vunpack.c.l.bf16 %v872
        %v910 = vunpack.c.l.bf16 %v873
        %v911 = vunpack.c.l.bf16 %v874
        %v912 = vunpack.c.l.bf16 %v875
        %v913 = vunpack.c.l.bf16 %v876
        %v914 = vunpack.c.l.bf16 %v877
        %v915 = vunpack.c.l.bf16 %v878
        %953 = vrot.lane.b32.xlu0 %v879, 12
        %v954 = vpop.permute.xlu0 %953
        %955 = vrot.lane.b32.xlu0 %v880, 12
        %v956 = vpop.permute.xlu0 %955
        %957 = vrot.lane.b32.xlu0 %v881, 12
        %v958 = vpop.permute.xlu0 %957
        %959 = vrot.lane.b32.xlu0 %v882, 12
        %v960 = vpop.permute.xlu0 %959
        %961 = vrot.lane.b32.xlu0 %v883, 12
        %v962 = vpop.permute.xlu0 %961
        %963 = vrot.lane.b32.xlu0 %v884, 12
        %v964 = vpop.permute.xlu0 %963
        %965 = vrot.lane.b32.xlu0 %v885, 12
        %v966 = vpop.permute.xlu0 %965
        %967 = vrot.lane.b32.xlu0 %v886, 12
        %v968 = vpop.permute.xlu0 %967
        %969 = vrot.lane.b32.xlu0 %v887, 12
        %v970 = vpop.permute.xlu0 %969
        %971 = vrot.lane.b32.xlu0 %v888, 12
        %v972 = vpop.permute.xlu0 %971
        %973 = vrot.lane.b32.xlu0 %v889, 12
        %v974 = vpop.permute.xlu0 %973
        %975 = vrot.lane.b32.xlu0 %v890, 12
        %v976 = vpop.permute.xlu0 %975
        %977 = vrot.lane.b32.xlu0 %v891, 12
        %v978 = vpop.permute.xlu0 %977
        %979 = vrot.lane.b32.xlu0 %v892, 12
        %v980 = vpop.permute.xlu0 %979
        %981 = vrot.lane.b32.xlu0 %v893, 12
        %v982 = vpop.permute.xlu0 %981
        %983 = vrot.lane.b32.xlu0 %v894, 12
        %v984 = vpop.permute.xlu0 %983
        %985 = vrot.lane.b32.xlu0 %v895, 12
        %v986 = vpop.permute.xlu0 %985
        %987 = vrot.lane.b32.xlu0 %v896, 12
        %v988 = vpop.permute.xlu0 %987
        %989 = vrot.lane.b32.xlu0 %v897, 12
        %v990 = vpop.permute.xlu0 %989
        %991 = vrot.lane.b32.xlu0 %v898, 12
        %v992 = vpop.permute.xlu0 %991
        %993 = vrot.lane.b32.xlu0 %v899, 12
        %v994 = vpop.permute.xlu0 %993
        %995 = vrot.lane.b32.xlu0 %v900, 12
        %v996 = vpop.permute.xlu0 %995
        %997 = vrot.lane.b32.xlu0 %v901, 12
        %v998 = vpop.permute.xlu0 %997
        %999 = vrot.lane.b32.xlu0 %v902, 12
        %v1000 = vpop.permute.xlu0 %999
        %1001 = vrot.lane.b32.xlu0 %v903, 12
        %v1002 = vpop.permute.xlu0 %1001
        %1003 = vrot.lane.b32.xlu0 %v904, 12
        %v1004 = vpop.permute.xlu0 %1003
        %1005 = vrot.lane.b32.xlu0 %v905, 12
        %v1006 = vpop.permute.xlu0 %1005
        %1007 = vrot.lane.b32.xlu0 %v906, 12
        %v1008 = vpop.permute.xlu0 %1007
        %1009 = vrot.lane.b32.xlu0 %v907, 12
        %v1010 = vpop.permute.xlu0 %1009
        %1011 = vrot.lane.b32.xlu0 %v908, 12
        %v1012 = vpop.permute.xlu0 %1011
        %1013 = vrot.lane.b32.xlu0 %v909, 12
        %v1014 = vpop.permute.xlu0 %1013
        %1015 = vrot.lane.b32.xlu0 %v910, 12
        %v1016 = vpop.permute.xlu0 %1015
        %1017 = vrot.lane.b32.xlu0 %v911, 12
        %v1018 = vpop.permute.xlu0 %1017
        %1019 = vrot.lane.b32.xlu0 %v912, 12
        %v1020 = vpop.permute.xlu0 %1019
        %1021 = vrot.lane.b32.xlu0 %v913, 12
        %v1022 = vpop.permute.xlu0 %1021
        %1023 = vrot.lane.b32.xlu0 %v914, 12
        %v1024 = vpop.permute.xlu0 %1023
        %1025 = vrot.lane.b32.xlu0 %v915, 12
        %v1026 = vpop.permute.xlu0 %1025
        %vm1064 = vcmask 130146
        %1065 = vst.msk [vmem:[#allocation2 - $0x2] sm:$0xfc] %vm1064, %v954
        %vm1066 = vcmask 130144
        %1067 = vst.msk [vmem:[#allocation2 + $0x6] sm:$0xff] %vm1066, %v956
        %1068 = vst.msk [vmem:[#allocation2 + $0xe] sm:$0xff] %vm1066, %v958
        %1069 = vst.msk [vmem:[#allocation2 + $0x16] sm:$0xff] %vm1066, %v960
        %1070 = vst.msk [vmem:[#allocation2 + $0x1e] sm:$0xff] %vm1066, %v962
        %1071 = vst.msk [vmem:[#allocation2 + $0x26] sm:$0xff] %vm1066, %v964
        %1072 = vst.msk [vmem:[#allocation2 + $0x2e] sm:$0xff] %vm1066, %v966
        %1073 = vst.msk [vmem:[#allocation2 + $0x36] sm:$0xff] %vm1066, %v968
        %1074 = vst.msk [vmem:[#allocation2 + $0x3e] sm:$0xff] %vm1066, %v970
        %1075 = vst.msk [vmem:[#allocation2 + $0x46] sm:$0xff] %vm1066, %v972
        %1076 = vst.msk [vmem:[#allocation2 + $0x4e] sm:$0xff] %vm1066, %v974
        %1077 = vst.msk [vmem:[#allocation2 + $0x56] sm:$0xff] %vm1066, %v976
        %1078 = vst.msk [vmem:[#allocation2 + $0x5e] sm:$0xff] %vm1066, %v978
        %1079 = vst.msk [vmem:[#allocation2 + $0x66] sm:$0xff] %vm1066, %v980
        %1080 = vst.msk [vmem:[#allocation2 + $0x6e] sm:$0xff] %vm1066, %v982
        %1081 = vst.msk [vmem:[#allocation2 + $0x76] sm:$0xff] %vm1066, %v984
        %1082 = vst.msk [vmem:[#allocation2 + $0x7e] sm:$0xff] %vm1066, %v986
        %1083 = vst.msk [vmem:[#allocation2 + $0x86] sm:$0xff] %vm1066, %v988
        %1084 = vst.msk [vmem:[#allocation2 + $0x8e] sm:$0xff] %vm1066, %v990
        %1085 = vst.msk [vmem:[#allocation2 + $0x96] sm:$0xff] %vm1066, %v992
        %1086 = vst.msk [vmem:[#allocation2 + $0x9e] sm:$0xff] %vm1066, %v994
        %1087 = vst.msk [vmem:[#allocation2 + $0xa6] sm:$0xff] %vm1066, %v996
        %1088 = vst.msk [vmem:[#allocation2 + $0xae] sm:$0xff] %vm1066, %v998
        %1089 = vst.msk [vmem:[#allocation2 + $0xb6] sm:$0xff] %vm1066, %v1000
        %1090 = vst.msk [vmem:[#allocation2 + $0xbe] sm:$0xff] %vm1066, %v1002
        %1091 = vst.msk [vmem:[#allocation2 + $0xc6] sm:$0xff] %vm1066, %v1004
        %1092 = vst.msk [vmem:[#allocation2 + $0xce] sm:$0xff] %vm1066, %v1006
        %1093 = vst.msk [vmem:[#allocation2 + $0xd6] sm:$0xff] %vm1066, %v1008
        %1094 = vst.msk [vmem:[#allocation2 + $0xde] sm:$0xff] %vm1066, %v1010
        %1095 = vst.msk [vmem:[#allocation2 + $0xe6] sm:$0xff] %vm1066, %v1012
        %1096 = vst.msk [vmem:[#allocation2 + $0xee] sm:$0xff] %vm1066, %v1014
        %1097 = vst.msk [vmem:[#allocation2 + $0xf6] sm:$0xff] %vm1066, %v1016
        %1098 = vst.msk [vmem:[#allocation2 + $0xfe] sm:$0xff] %vm1066, %v1018
        %1099 = vst.msk [vmem:[#allocation2 + $0x106] sm:$0xff] %vm1066, %v1020
        %1100 = vst.msk [vmem:[#allocation2 + $0x10e] sm:$0xff] %vm1066, %v1022
        %1101 = vst.msk [vmem:[#allocation2 + $0x116] sm:$0xff] %vm1066, %v1024
        %vm1102 = vcmask 124000
        %1103 = vst.msk [vmem:[#allocation2 + $0x11e] sm:$0x3] %vm1102, %v1026
        %v1104 = vld [vmem:[%s194 + $0x8] sm:$0xe]
        %v1105 = vld [vmem:[%s194 + $0xc] sm:$0xf]
        %v1106 = vld [vmem:[%s194 + $0x10] sm:$0xf]
        %v1107 = vld [vmem:[%s194 + $0x14] sm:$0xf]
        %v1108 = vld [vmem:[%s194 + $0x18] sm:$0xf]
        %v1109 = vld [vmem:[%s194 + $0x1c] sm:$0xf]
        %v1110 = vld [vmem:[%s194 + $0x20] sm:$0xf]
        %v1111 = vld [vmem:[%s194 + $0x24] sm:$0xf]
        %v1112 = vld [vmem:[%s194 + $0x28] sm:$0xf]
        %v1113 = vld [vmem:[%s194 + $0x2c] sm:$0xf]
        %v1114 = vld [vmem:[%s194 + $0x30] sm:$0xf]
        %v1115 = vld [vmem:[%s194 + $0x34] sm:$0xf]
        %v1116 = vld [vmem:[%s194 + $0x38] sm:$0xf]
        %v1117 = vld [vmem:[%s194 + $0x3c] sm:$0xf]
        %v1118 = vld [vmem:[%s194 + $0x40] sm:$0xf]
        %v1119 = vld [vmem:[%s194 + $0x44] sm:$0xf]
        %v1120 = vld [vmem:[%s194 + $0x48] sm:$0xf]
        %v1121 = vld [vmem:[%s194 + $0x4c] sm:$0xf]
        %v1122 = vld [vmem:[%s194 + $0x50] sm:$0xf]
        %v1123 = vld [vmem:[%s194 + $0x54] sm:$0xf]
        %v1124 = vld [vmem:[%s194 + $0x58] sm:$0xf]
        %v1125 = vld [vmem:[%s194 + $0x5c] sm:$0xf]
        %v1126 = vld [vmem:[%s194 + $0x60] sm:$0xf]
        %v1127 = vld [vmem:[%s194 + $0x64] sm:$0xf]
        %v1128 = vld [vmem:[%s194 + $0x68] sm:$0xf]
        %v1129 = vld [vmem:[%s194 + $0x6c] sm:$0xf]
        %v1130 = vld [vmem:[%s194 + $0x70] sm:$0xf]
        %v1131 = vld [vmem:[%s194 + $0x74] sm:$0xf]
        %v1132 = vld [vmem:[%s194 + $0x78] sm:$0xf]
        %v1133 = vld [vmem:[%s194 + $0x7c] sm:$0xf]
        %v1134 = vld [vmem:[%s194 + $0x80] sm:$0xf]
        %v1135 = vld [vmem:[%s194 + $0x84] sm:$0xf]
        %v1136 = vld [vmem:[%s194 + $0x88] sm:$0xf]
        %v1137 = vld [vmem:[%s194 + $0x8c] sm:$0xf]
        %v1138 = vld [vmem:[%s194 + $0x90] sm:$0xf]
        %v1139 = vld [vmem:[%s194 + $0x94] sm:$0xf]
        %v1140 = vld [vmem:[%s194 + $0x98] sm:$0x3]
        %v1141 = vunpack.c.l.bf16 %v1104
        %v1142 = vunpack.c.l.bf16 %v1105
        %v1143 = vunpack.c.l.bf16 %v1106
        %v1144 = vunpack.c.l.bf16 %v1107
        %v1145 = vunpack.c.l.bf16 %v1108
        %v1146 = vunpack.c.l.bf16 %v1109
        %v1147 = vunpack.c.l.bf16 %v1110
        %v1148 = vunpack.c.l.bf16 %v1111
        %v1149 = vunpack.c.l.bf16 %v1112
        %v1150 = vunpack.c.l.bf16 %v1113
        %v1151 = vunpack.c.l.bf16 %v1114
        %v1152 = vunpack.c.l.bf16 %v1115
        %v1153 = vunpack.c.l.bf16 %v1116
        %v1154 = vunpack.c.l.bf16 %v1117
        %v1155 = vunpack.c.l.bf16 %v1118
        %v1156 = vunpack.c.l.bf16 %v1119
        %v1157 = vunpack.c.l.bf16 %v1120
        %v1158 = vunpack.c.l.bf16 %v1121
        %v1159 = vunpack.c.l.bf16 %v1122
        %v1160 = vunpack.c.l.bf16 %v1123
        %v1161 = vunpack.c.l.bf16 %v1124
        %v1162 = vunpack.c.l.bf16 %v1125
        %v1163 = vunpack.c.l.bf16 %v1126
        %v1164 = vunpack.c.l.bf16 %v1127
        %v1165 = vunpack.c.l.bf16 %v1128
        %v1166 = vunpack.c.l.bf16 %v1129
        %v1167 = vunpack.c.l.bf16 %v1130
        %v1168 = vunpack.c.l.bf16 %v1131
        %v1169 = vunpack.c.l.bf16 %v1132
        %v1170 = vunpack.c.l.bf16 %v1133
        %v1171 = vunpack.c.l.bf16 %v1134
        %v1172 = vunpack.c.l.bf16 %v1135
        %v1173 = vunpack.c.l.bf16 %v1136
        %v1174 = vunpack.c.l.bf16 %v1137
        %v1175 = vunpack.c.l.bf16 %v1138
        %v1176 = vunpack.c.l.bf16 %v1139
        %v1177 = vunpack.c.l.bf16 %v1140
        %1215 = vrot.lane.b32.xlu0 %v1141, 16
        %v1216 = vpop.permute.xlu0 %1215
        %1217 = vrot.lane.b32.xlu0 %v1142, 16
        %v1218 = vpop.permute.xlu0 %1217
        %1219 = vrot.lane.b32.xlu0 %v1143, 16
        %v1220 = vpop.permute.xlu0 %1219
        %1221 = vrot.lane.b32.xlu0 %v1144, 16
        %v1222 = vpop.permute.xlu0 %1221
        %1223 = vrot.lane.b32.xlu0 %v1145, 16
        %v1224 = vpop.permute.xlu0 %1223
        %1225 = vrot.lane.b32.xlu0 %v1146, 16
        %v1226 = vpop.permute.xlu0 %1225
        %1227 = vrot.lane.b32.xlu0 %v1147, 16
        %v1228 = vpop.permute.xlu0 %1227
        %1229 = vrot.lane.b32.xlu0 %v1148, 16
        %v1230 = vpop.permute.xlu0 %1229
        %1231 = vrot.lane.b32.xlu0 %v1149, 16
        %v1232 = vpop.permute.xlu0 %1231
        %1233 = vrot.lane.b32.xlu0 %v1150, 16
        %v1234 = vpop.permute.xlu0 %1233
        %1235 = vrot.lane.b32.xlu0 %v1151, 16
        %v1236 = vpop.permute.xlu0 %1235
        %1237 = vrot.lane.b32.xlu0 %v1152, 16
        %v1238 = vpop.permute.xlu0 %1237
        %1239 = vrot.lane.b32.xlu0 %v1153, 16
        %v1240 = vpop.permute.xlu0 %1239
        %1241 = vrot.lane.b32.xlu0 %v1154, 16
        %v1242 = vpop.permute.xlu0 %1241
        %1243 = vrot.lane.b32.xlu0 %v1155, 16
        %v1244 = vpop.permute.xlu0 %1243
        %1245 = vrot.lane.b32.xlu0 %v1156, 16
        %v1246 = vpop.permute.xlu0 %1245
        %1247 = vrot.lane.b32.xlu0 %v1157, 16
        %v1248 = vpop.permute.xlu0 %1247
        %1249 = vrot.lane.b32.xlu0 %v1158, 16
        %v1250 = vpop.permute.xlu0 %1249
        %1251 = vrot.lane.b32.xlu0 %v1159, 16
        %v1252 = vpop.permute.xlu0 %1251
        %1253 = vrot.lane.b32.xlu0 %v1160, 16
        %v1254 = vpop.permute.xlu0 %1253
        %1255 = vrot.lane.b32.xlu0 %v1161, 16
        %v1256 = vpop.permute.xlu0 %1255
        %1257 = vrot.lane.b32.xlu0 %v1162, 16
        %v1258 = vpop.permute.xlu0 %1257
        %1259 = vrot.lane.b32.xlu0 %v1163, 16
        %v1260 = vpop.permute.xlu0 %1259
        %1261 = vrot.lane.b32.xlu0 %v1164, 16
        %v1262 = vpop.permute.xlu0 %1261
        %1263 = vrot.lane.b32.xlu0 %v1165, 16
        %v1264 = vpop.permute.xlu0 %1263
        %1265 = vrot.lane.b32.xlu0 %v1166, 16
        %v1266 = vpop.permute.xlu0 %1265
        %1267 = vrot.lane.b32.xlu0 %v1167, 16
        %v1268 = vpop.permute.xlu0 %1267
        %1269 = vrot.lane.b32.xlu0 %v1168, 16
        %v1270 = vpop.permute.xlu0 %1269
        %1271 = vrot.lane.b32.xlu0 %v1169, 16
        %v1272 = vpop.permute.xlu0 %1271
        %1273 = vrot.lane.b32.xlu0 %v1170, 16
        %v1274 = vpop.permute.xlu0 %1273
        %1275 = vrot.lane.b32.xlu0 %v1171, 16
        %v1276 = vpop.permute.xlu0 %1275
        %1277 = vrot.lane.b32.xlu0 %v1172, 16
        %v1278 = vpop.permute.xlu0 %1277
        %1279 = vrot.lane.b32.xlu0 %v1173, 16
        %v1280 = vpop.permute.xlu0 %1279
        %1281 = vrot.lane.b32.xlu0 %v1174, 16
        %v1282 = vpop.permute.xlu0 %1281
        %1283 = vrot.lane.b32.xlu0 %v1175, 16
        %v1284 = vpop.permute.xlu0 %1283
        %1285 = vrot.lane.b32.xlu0 %v1176, 16
        %v1286 = vpop.permute.xlu0 %1285
        %1287 = vrot.lane.b32.xlu0 %v1177, 16
        %v1288 = vpop.permute.xlu0 %1287
        %vm1326 = vcmask 162947
        %1327 = vst.msk [vmem:[#allocation2 - $0x3] sm:$0xf8] %vm1326, %v1216
        %vm1328 = vcmask 162944
        %1329 = vst.msk [vmem:[#allocation2 + $0x5] sm:$0xff] %vm1328, %v1218
        %1330 = vst.msk [vmem:[#allocation2 + $0xd] sm:$0xff] %vm1328, %v1220
        %1331 = vst.msk [vmem:[#allocation2 + $0x15] sm:$0xff] %vm1328, %v1222
        %1332 = vst.msk [vmem:[#allocation2 + $0x1d] sm:$0xff] %vm1328, %v1224
        %1333 = vst.msk [vmem:[#allocation2 + $0x25] sm:$0xff] %vm1328, %v1226
        %1334 = vst.msk [vmem:[#allocation2 + $0x2d] sm:$0xff] %vm1328, %v1228
        %1335 = vst.msk [vmem:[#allocation2 + $0x35] sm:$0xff] %vm1328, %v1230
        %1336 = vst.msk [vmem:[#allocation2 + $0x3d] sm:$0xff] %vm1328, %v1232
        %1337 = vst.msk [vmem:[#allocation2 + $0x45] sm:$0xff] %vm1328, %v1234
        %1338 = vst.msk [vmem:[#allocation2 + $0x4d] sm:$0xff] %vm1328, %v1236
        %1339 = vst.msk [vmem:[#allocation2 + $0x55] sm:$0xff] %vm1328, %v1238
        %1340 = vst.msk [vmem:[#allocation2 + $0x5d] sm:$0xff] %vm1328, %v1240
        %1341 = vst.msk [vmem:[#allocation2 + $0x65] sm:$0xff] %vm1328, %v1242
        %1342 = vst.msk [vmem:[#allocation2 + $0x6d] sm:$0xff] %vm1328, %v1244
        %1343 = vst.msk [vmem:[#allocation2 + $0x75] sm:$0xff] %vm1328, %v1246
        %1344 = vst.msk [vmem:[#allocation2 + $0x7d] sm:$0xff] %vm1328, %v1248
        %1345 = vst.msk [vmem:[#allocation2 + $0x85] sm:$0xff] %vm1328, %v1250
        %1346 = vst.msk [vmem:[#allocation2 + $0x8d] sm:$0xff] %vm1328, %v1252
        %1347 = vst.msk [vmem:[#allocation2 + $0x95] sm:$0xff] %vm1328, %v1254
        %1348 = vst.msk [vmem:[#allocation2 + $0x9d] sm:$0xff] %vm1328, %v1256
        %1349 = vst.msk [vmem:[#allocation2 + $0xa5] sm:$0xff] %vm1328, %v1258
        %1350 = vst.msk [vmem:[#allocation2 + $0xad] sm:$0xff] %vm1328, %v1260
        %1351 = vst.msk [vmem:[#allocation2 + $0xb5] sm:$0xff] %vm1328, %v1262
        %1352 = vst.msk [vmem:[#allocation2 + $0xbd] sm:$0xff] %vm1328, %v1264
        %1353 = vst.msk [vmem:[#allocation2 + $0xc5] sm:$0xff] %vm1328, %v1266
        %1354 = vst.msk [vmem:[#allocation2 + $0xcd] sm:$0xff] %vm1328, %v1268
        %1355 = vst.msk [vmem:[#allocation2 + $0xd5] sm:$0xff] %vm1328, %v1270
        %1356 = vst.msk [vmem:[#allocation2 + $0xdd] sm:$0xff] %vm1328, %v1272
        %1357 = vst.msk [vmem:[#allocation2 + $0xe5] sm:$0xff] %vm1328, %v1274
        %1358 = vst.msk [vmem:[#allocation2 + $0xed] sm:$0xff] %vm1328, %v1276
        %1359 = vst.msk [vmem:[#allocation2 + $0xf5] sm:$0xff] %vm1328, %v1278
        %1360 = vst.msk [vmem:[#allocation2 + $0xfd] sm:$0xff] %vm1328, %v1280
        %1361 = vst.msk [vmem:[#allocation2 + $0x105] sm:$0xff] %vm1328, %v1282
        %1362 = vst.msk [vmem:[#allocation2 + $0x10d] sm:$0xff] %vm1328, %v1284
        %1363 = vst.msk [vmem:[#allocation2 + $0x115] sm:$0xff] %vm1328, %v1286
        %vm1364 = vcmask 157824
        %1365 = vst.msk [vmem:[#allocation2 + $0x11d] sm:$0x7] %vm1364, %v1288
        %v1366 = vld [vmem:[%s194 + $0x8] sm:$0xc]
        %v1367 = vld [vmem:[%s194 + $0xc] sm:$0xf]
        %v1368 = vld [vmem:[%s194 + $0x10] sm:$0xf]
        %v1369 = vld [vmem:[%s194 + $0x14] sm:$0xf]
        %v1370 = vld [vmem:[%s194 + $0x18] sm:$0xf]
        %v1371 = vld [vmem:[%s194 + $0x1c] sm:$0xf]
        %v1372 = vld [vmem:[%s194 + $0x20] sm:$0xf]
        %v1373 = vld [vmem:[%s194 + $0x24] sm:$0xf]
        %v1374 = vld [vmem:[%s194 + $0x28] sm:$0xf]
        %v1375 = vld [vmem:[%s194 + $0x2c] sm:$0xf]
        %v1376 = vld [vmem:[%s194 + $0x30] sm:$0xf]
        %v1377 = vld [vmem:[%s194 + $0x34] sm:$0xf]
        %v1378 = vld [vmem:[%s194 + $0x38] sm:$0xf]
        %v1379 = vld [vmem:[%s194 + $0x3c] sm:$0xf]
        %v1380 = vld [vmem:[%s194 + $0x40] sm:$0xf]
        %v1381 = vld [vmem:[%s194 + $0x44] sm:$0xf]
        %v1382 = vld [vmem:[%s194 + $0x48] sm:$0xf]
        %v1383 = vld [vmem:[%s194 + $0x4c] sm:$0xf]
        %v1384 = vld [vmem:[%s194 + $0x50] sm:$0xf]
        %v1385 = vld [vmem:[%s194 + $0x54] sm:$0xf]
        %v1386 = vld [vmem:[%s194 + $0x58] sm:$0xf]
        %v1387 = vld [vmem:[%s194 + $0x5c] sm:$0xf]
        %v1388 = vld [vmem:[%s194 + $0x60] sm:$0xf]
        %v1389 = vld [vmem:[%s194 + $0x64] sm:$0xf]
        %v1390 = vld [vmem:[%s194 + $0x68] sm:$0xf]
        %v1391 = vld [vmem:[%s194 + $0x6c] sm:$0xf]
        %v1392 = vld [vmem:[%s194 + $0x70] sm:$0xf]
        %v1393 = vld [vmem:[%s194 + $0x74] sm:$0xf]
        %v1394 = vld [vmem:[%s194 + $0x78] sm:$0xf]
        %v1395 = vld [vmem:[%s194 + $0x7c] sm:$0xf]
        %v1396 = vld [vmem:[%s194 + $0x80] sm:$0xf]
        %v1397 = vld [vmem:[%s194 + $0x84] sm:$0xf]
        %v1398 = vld [vmem:[%s194 + $0x88] sm:$0xf]
        %v1399 = vld [vmem:[%s194 + $0x8c] sm:$0xf]
        %v1400 = vld [vmem:[%s194 + $0x90] sm:$0xf]
        %v1401 = vld [vmem:[%s194 + $0x94] sm:$0xf]
        %v1402 = vld [vmem:[%s194 + $0x98] sm:$0x3]
        %v1403 = vunpack.c.l.bf16 %v1366
        %v1404 = vunpack.c.l.bf16 %v1367
        %v1405 = vunpack.c.l.bf16 %v1368
        %v1406 = vunpack.c.l.bf16 %v1369
        %v1407 = vunpack.c.l.bf16 %v1370
        %v1408 = vunpack.c.l.bf16 %v1371
        %v1409 = vunpack.c.l.bf16 %v1372
        %v1410 = vunpack.c.l.bf16 %v1373
        %v1411 = vunpack.c.l.bf16 %v1374
        %v1412 = vunpack.c.l.bf16 %v1375
        %v1413 = vunpack.c.l.bf16 %v1376
        %v1414 = vunpack.c.l.bf16 %v1377
        %v1415 = vunpack.c.l.bf16 %v1378
        %v1416 = vunpack.c.l.bf16 %v1379
        %v1417 = vunpack.c.l.bf16 %v1380
        %v1418 = vunpack.c.l.bf16 %v1381
        %v1419 = vunpack.c.l.bf16 %v1382
        %v1420 = vunpack.c.l.bf16 %v1383
        %v1421 = vunpack.c.l.bf16 %v1384
        %v1422 = vunpack.c.l.bf16 %v1385
        %v1423 = vunpack.c.l.bf16 %v1386
        %v1424 = vunpack.c.l.bf16 %v1387
        %v1425 = vunpack.c.l.bf16 %v1388
        %v1426 = vunpack.c.l.bf16 %v1389
        %v1427 = vunpack.c.l.bf16 %v1390
        %v1428 = vunpack.c.l.bf16 %v1391
        %v1429 = vunpack.c.l.bf16 %v1392
        %v1430 = vunpack.c.l.bf16 %v1393
        %v1431 = vunpack.c.l.bf16 %v1394
        %v1432 = vunpack.c.l.bf16 %v1395
        %v1433 = vunpack.c.l.bf16 %v1396
        %v1434 = vunpack.c.l.bf16 %v1397
        %v1435 = vunpack.c.l.bf16 %v1398
        %v1436 = vunpack.c.l.bf16 %v1399
        %v1437 = vunpack.c.l.bf16 %v1400
        %v1438 = vunpack.c.l.bf16 %v1401
        %v1439 = vunpack.c.l.bf16 %v1402
        %1477 = vrot.lane.b32.xlu0 %v1403, 20
        %v1478 = vpop.permute.xlu0 %1477
        %1479 = vrot.lane.b32.xlu0 %v1404, 20
        %v1480 = vpop.permute.xlu0 %1479
        %1481 = vrot.lane.b32.xlu0 %v1405, 20
        %v1482 = vpop.permute.xlu0 %1481
        %1483 = vrot.lane.b32.xlu0 %v1406, 20
        %v1484 = vpop.permute.xlu0 %1483
        %1485 = vrot.lane.b32.xlu0 %v1407, 20
        %v1486 = vpop.permute.xlu0 %1485
        %1487 = vrot.lane.b32.xlu0 %v1408, 20
        %v1488 = vpop.permute.xlu0 %1487
        %1489 = vrot.lane.b32.xlu0 %v1409, 20
        %v1490 = vpop.permute.xlu0 %1489
        %1491 = vrot.lane.b32.xlu0 %v1410, 20
        %v1492 = vpop.permute.xlu0 %1491
        %1493 = vrot.lane.b32.xlu0 %v1411, 20
        %v1494 = vpop.permute.xlu0 %1493
        %1495 = vrot.lane.b32.xlu0 %v1412, 20
        %v1496 = vpop.permute.xlu0 %1495
        %1497 = vrot.lane.b32.xlu0 %v1413, 20
        %v1498 = vpop.permute.xlu0 %1497
        %1499 = vrot.lane.b32.xlu0 %v1414, 20
        %v1500 = vpop.permute.xlu0 %1499
        %1501 = vrot.lane.b32.xlu0 %v1415, 20
        %v1502 = vpop.permute.xlu0 %1501
        %1503 = vrot.lane.b32.xlu0 %v1416, 20
        %v1504 = vpop.permute.xlu0 %1503
        %1505 = vrot.lane.b32.xlu0 %v1417, 20
        %v1506 = vpop.permute.xlu0 %1505
        %1507 = vrot.lane.b32.xlu0 %v1418, 20
        %v1508 = vpop.permute.xlu0 %1507
        %1509 = vrot.lane.b32.xlu0 %v1419, 20
        %v1510 = vpop.permute.xlu0 %1509
        %1511 = vrot.lane.b32.xlu0 %v1420, 20
        %v1512 = vpop.permute.xlu0 %1511
        %1513 = vrot.lane.b32.xlu0 %v1421, 20
        %v1514 = vpop.permute.xlu0 %1513
        %1515 = vrot.lane.b32.xlu0 %v1422, 20
        %v1516 = vpop.permute.xlu0 %1515
        %1517 = vrot.lane.b32.xlu0 %v1423, 20
        %v1518 = vpop.permute.xlu0 %1517
        %1519 = vrot.lane.b32.xlu0 %v1424, 20
        %v1520 = vpop.permute.xlu0 %1519
        %1521 = vrot.lane.b32.xlu0 %v1425, 20
        %v1522 = vpop.permute.xlu0 %1521
        %1523 = vrot.lane.b32.xlu0 %v1426, 20
        %v1524 = vpop.permute.xlu0 %1523
        %1525 = vrot.lane.b32.xlu0 %v1427, 20
        %v1526 = vpop.permute.xlu0 %1525
        %1527 = vrot.lane.b32.xlu0 %v1428, 20
        %v1528 = vpop.permute.xlu0 %1527
        %1529 = vrot.lane.b32.xlu0 %v1429, 20
        %v1530 = vpop.permute.xlu0 %1529
        %1531 = vrot.lane.b32.xlu0 %v1430, 20
        %v1532 = vpop.permute.xlu0 %1531
        %1533 = vrot.lane.b32.xlu0 %v1431, 20
        %v1534 = vpop.permute.xlu0 %1533
        %1535 = vrot.lane.b32.xlu0 %v1432, 20
        %v1536 = vpop.permute.xlu0 %1535
        %1537 = vrot.lane.b32.xlu0 %v1433, 20
        %v1538 = vpop.permute.xlu0 %1537
        %1539 = vrot.lane.b32.xlu0 %v1434, 20
        %v1540 = vpop.permute.xlu0 %1539
        %1541 = vrot.lane.b32.xlu0 %v1435, 20
        %v1542 = vpop.permute.xlu0 %1541
        %1543 = vrot.lane.b32.xlu0 %v1436, 20
        %v1544 = vpop.permute.xlu0 %1543
        %1545 = vrot.lane.b32.xlu0 %v1437, 20
        %v1546 = vpop.permute.xlu0 %1545
        %1547 = vrot.lane.b32.xlu0 %v1438, 20
        %v1548 = vpop.permute.xlu0 %1547
        %1549 = vrot.lane.b32.xlu0 %v1439, 20
        %v1550 = vpop.permute.xlu0 %1549
        %vm1588 = vcmask 195748
        %1589 = vst.msk [vmem:[#allocation2 - $0x4] sm:$0xf0] %vm1588, %v1478
        %vm1590 = vcmask 195744
        %1591 = vst.msk [vmem:[#allocation2 + $0x4] sm:$0xff] %vm1590, %v1480
        %1592 = vst.msk [vmem:[#allocation2 + $0xc] sm:$0xff] %vm1590, %v1482
        %1593 = vst.msk [vmem:[#allocation2 + $0x14] sm:$0xff] %vm1590, %v1484
        %1594 = vst.msk [vmem:[#allocation2 + $0x1c] sm:$0xff] %vm1590, %v1486
        %1595 = vst.msk [vmem:[#allocation2 + $0x24] sm:$0xff] %vm1590, %v1488
        %1596 = vst.msk [vmem:[#allocation2 + $0x2c] sm:$0xff] %vm1590, %v1490
        %1597 = vst.msk [vmem:[#allocation2 + $0x34] sm:$0xff] %vm1590, %v1492
        %1598 = vst.msk [vmem:[#allocation2 + $0x3c] sm:$0xff] %vm1590, %v1494
        %1599 = vst.msk [vmem:[#allocation2 + $0x44] sm:$0xff] %vm1590, %v1496
        %1600 = vst.msk [vmem:[#allocation2 + $0x4c] sm:$0xff] %vm1590, %v1498
        %1601 = vst.msk [vmem:[#allocation2 + $0x54] sm:$0xff] %vm1590, %v1500
        %1602 = vst.msk [vmem:[#allocation2 + $0x5c] sm:$0xff] %vm1590, %v1502
        %1603 = vst.msk [vmem:[#allocation2 + $0x64] sm:$0xff] %vm1590, %v1504
        %1604 = vst.msk [vmem:[#allocation2 + $0x6c] sm:$0xff] %vm1590, %v1506
        %1605 = vst.msk [vmem:[#allocation2 + $0x74] sm:$0xff] %vm1590, %v1508
        %1606 = vst.msk [vmem:[#allocation2 + $0x7c] sm:$0xff] %vm1590, %v1510
        %1607 = vst.msk [vmem:[#allocation2 + $0x84] sm:$0xff] %vm1590, %v1512
        %1608 = vst.msk [vmem:[#allocation2 + $0x8c] sm:$0xff] %vm1590, %v1514
        %1609 = vst.msk [vmem:[#allocation2 + $0x94] sm:$0xff] %vm1590, %v1516
        %1610 = vst.msk [vmem:[#allocation2 + $0x9c] sm:$0xff] %vm1590, %v1518
        %1611 = vst.msk [vmem:[#allocation2 + $0xa4] sm:$0xff] %vm1590, %v1520
        %1612 = vst.msk [vmem:[#allocation2 + $0xac] sm:$0xff] %vm1590, %v1522
        %1613 = vst.msk [vmem:[#allocation2 + $0xb4] sm:$0xff] %vm1590, %v1524
        %1614 = vst.msk [vmem:[#allocation2 + $0xbc] sm:$0xff] %vm1590, %v1526
        %1615 = vst.msk [vmem:[#allocation2 + $0xc4] sm:$0xff] %vm1590, %v1528
        %1616 = vst.msk [vmem:[#allocation2 + $0xcc] sm:$0xff] %vm1590, %v1530
        %1617 = vst.msk [vmem:[#allocation2 + $0xd4] sm:$0xff] %vm1590, %v1532
        %1618 = vst.msk [vmem:[#allocation2 + $0xdc] sm:$0xff] %vm1590, %v1534
        %1619 = vst.msk [vmem:[#allocation2 + $0xe4] sm:$0xff] %vm1590, %v1536
        %1620 = vst.msk [vmem:[#allocation2 + $0xec] sm:$0xff] %vm1590, %v1538
        %1621 = vst.msk [vmem:[#allocation2 + $0xf4] sm:$0xff] %vm1590, %v1540
        %1622 = vst.msk [vmem:[#allocation2 + $0xfc] sm:$0xff] %vm1590, %v1542
        %1623 = vst.msk [vmem:[#allocation2 + $0x104] sm:$0xff] %vm1590, %v1544
        %1624 = vst.msk [vmem:[#allocation2 + $0x10c] sm:$0xff] %vm1590, %v1546
        %1625 = vst.msk [vmem:[#allocation2 + $0x114] sm:$0xff] %vm1590, %v1548
        %vm1626 = vcmask 191648
        %1627 = vst.msk [vmem:[#allocation2 + $0x11c] sm:$0xf] %vm1626, %v1550
        %v1628 = vld [vmem:[%s194 + $0x10] sm:$0xc]
        %v1629 = vld [vmem:[%s194 + $0x14] sm:$0xf]
        %v1630 = vld [vmem:[%s194 + $0x18] sm:$0xf]
        %v1631 = vld [vmem:[%s194 + $0x1c] sm:$0xf]
        %v1632 = vld [vmem:[%s194 + $0x20] sm:$0xf]
        %v1633 = vld [vmem:[%s194 + $0x24] sm:$0xf]
        %v1634 = vld [vmem:[%s194 + $0x28] sm:$0xf]
        %v1635 = vld [vmem:[%s194 + $0x2c] sm:$0xf]
        %v1636 = vld [vmem:[%s194 + $0x30] sm:$0xf]
        %v1637 = vld [vmem:[%s194 + $0x34] sm:$0xf]
        %v1638 = vld [vmem:[%s194 + $0x38] sm:$0xf]
        %v1639 = vld [vmem:[%s194 + $0x3c] sm:$0xf]
        %v1640 = vld [vmem:[%s194 + $0x40] sm:$0xf]
        %v1641 = vld [vmem:[%s194 + $0x44] sm:$0xf]
        %v1642 = vld [vmem:[%s194 + $0x48] sm:$0xf]
        %v1643 = vld [vmem:[%s194 + $0x4c] sm:$0xf]
        %v1644 = vld [vmem:[%s194 + $0x50] sm:$0xf]
        %v1645 = vld [vmem:[%s194 + $0x54] sm:$0xf]
        %v1646 = vld [vmem:[%s194 + $0x58] sm:$0xf]
        %v1647 = vld [vmem:[%s194 + $0x5c] sm:$0xf]
        %v1648 = vld [vmem:[%s194 + $0x60] sm:$0xf]
        %v1649 = vld [vmem:[%s194 + $0x64] sm:$0xf]
        %v1650 = vld [vmem:[%s194 + $0x68] sm:$0xf]
        %v1651 = vld [vmem:[%s194 + $0x6c] sm:$0xf]
        %v1652 = vld [vmem:[%s194 + $0x70] sm:$0xf]
        %v1653 = vld [vmem:[%s194 + $0x74] sm:$0xf]
        %v1654 = vld [vmem:[%s194 + $0x78] sm:$0xf]
        %v1655 = vld [vmem:[%s194 + $0x7c] sm:$0xf]
        %v1656 = vld [vmem:[%s194 + $0x80] sm:$0xf]
        %v1657 = vld [vmem:[%s194 + $0x84] sm:$0xf]
        %v1658 = vld [vmem:[%s194 + $0x88] sm:$0xf]
        %v1659 = vld [vmem:[%s194 + $0x8c] sm:$0xf]
        %v1660 = vld [vmem:[%s194 + $0x90] sm:$0xf]
        %v1661 = vld [vmem:[%s194 + $0x94] sm:$0xf]
        %v1662 = vld [vmem:[%s194 + $0x98] sm:$0xf]
        %v1663 = vld [vmem:[%s194 + $0x9c] sm:$0xf]
        %v1664 = vld [vmem:[%s194 + $0xa0] sm:$0x3]
        %v1665 = vunpack.c.l.bf16 %v1628
        %v1666 = vunpack.c.l.bf16 %v1629
        %v1667 = vunpack.c.l.bf16 %v1630
        %v1668 = vunpack.c.l.bf16 %v1631
        %v1669 = vunpack.c.l.bf16 %v1632
        %v1670 = vunpack.c.l.bf16 %v1633
        %v1671 = vunpack.c.l.bf16 %v1634
        %v1672 = vunpack.c.l.bf16 %v1635
        %v1673 = vunpack.c.l.bf16 %v1636
        %v1674 = vunpack.c.l.bf16 %v1637
        %v1675 = vunpack.c.l.bf16 %v1638
        %v1676 = vunpack.c.l.bf16 %v1639
        %v1677 = vunpack.c.l.bf16 %v1640
        %v1678 = vunpack.c.l.bf16 %v1641
        %v1679 = vunpack.c.l.bf16 %v1642
        %v1680 = vunpack.c.l.bf16 %v1643
        %v1681 = vunpack.c.l.bf16 %v1644
        %v1682 = vunpack.c.l.bf16 %v1645
        %v1683 = vunpack.c.l.bf16 %v1646
        %v1684 = vunpack.c.l.bf16 %v1647
        %v1685 = vunpack.c.l.bf16 %v1648
        %v1686 = vunpack.c.l.bf16 %v1649
        %v1687 = vunpack.c.l.bf16 %v1650
        %v1688 = vunpack.c.l.bf16 %v1651
        %v1689 = vunpack.c.l.bf16 %v1652
        %v1690 = vunpack.c.l.bf16 %v1653
        %v1691 = vunpack.c.l.bf16 %v1654
        %v1692 = vunpack.c.l.bf16 %v1655
        %v1693 = vunpack.c.l.bf16 %v1656
        %v1694 = vunpack.c.l.bf16 %v1657
        %v1695 = vunpack.c.l.bf16 %v1658
        %v1696 = vunpack.c.l.bf16 %v1659
        %v1697 = vunpack.c.l.bf16 %v1660
        %v1698 = vunpack.c.l.bf16 %v1661
        %v1699 = vunpack.c.l.bf16 %v1662
        %v1700 = vunpack.c.l.bf16 %v1663
        %v1701 = vunpack.c.l.bf16 %v1664
        %1739 = vrot.lane.b32.xlu0 %v1665, 24
        %v1740 = vpop.permute.xlu0 %1739
        %1741 = vrot.lane.b32.xlu0 %v1666, 24
        %v1742 = vpop.permute.xlu0 %1741
        %1743 = vrot.lane.b32.xlu0 %v1667, 24
        %v1744 = vpop.permute.xlu0 %1743
        %1745 = vrot.lane.b32.xlu0 %v1668, 24
        %v1746 = vpop.permute.xlu0 %1745
        %1747 = vrot.lane.b32.xlu0 %v1669, 24
        %v1748 = vpop.permute.xlu0 %1747
        %1749 = vrot.lane.b32.xlu0 %v1670, 24
        %v1750 = vpop.permute.xlu0 %1749
        %1751 = vrot.lane.b32.xlu0 %v1671, 24
        %v1752 = vpop.permute.xlu0 %1751
        %1753 = vrot.lane.b32.xlu0 %v1672, 24
        %v1754 = vpop.permute.xlu0 %1753
        %1755 = vrot.lane.b32.xlu0 %v1673, 24
        %v1756 = vpop.permute.xlu0 %1755
        %1757 = vrot.lane.b32.xlu0 %v1674, 24
        %v1758 = vpop.permute.xlu0 %1757
        %1759 = vrot.lane.b32.xlu0 %v1675, 24
        %v1760 = vpop.permute.xlu0 %1759
        %1761 = vrot.lane.b32.xlu0 %v1676, 24
        %v1762 = vpop.permute.xlu0 %1761
        %1763 = vrot.lane.b32.xlu0 %v1677, 24
        %v1764 = vpop.permute.xlu0 %1763
        %1765 = vrot.lane.b32.xlu0 %v1678, 24
        %v1766 = vpop.permute.xlu0 %1765
        %1767 = vrot.lane.b32.xlu0 %v1679, 24
        %v1768 = vpop.permute.xlu0 %1767
        %1769 = vrot.lane.b32.xlu0 %v1680, 24
        %v1770 = vpop.permute.xlu0 %1769
        %1771 = vrot.lane.b32.xlu0 %v1681, 24
        %v1772 = vpop.permute.xlu0 %1771
        %1773 = vrot.lane.b32.xlu0 %v1682, 24
        %v1774 = vpop.permute.xlu0 %1773
        %1775 = vrot.lane.b32.xlu0 %v1683, 24
        %v1776 = vpop.permute.xlu0 %1775
        %1777 = vrot.lane.b32.xlu0 %v1684, 24
        %v1778 = vpop.permute.xlu0 %1777
        %1779 = vrot.lane.b32.xlu0 %v1685, 24
        %v1780 = vpop.permute.xlu0 %1779
        %1781 = vrot.lane.b32.xlu0 %v1686, 24
        %v1782 = vpop.permute.xlu0 %1781
        %1783 = vrot.lane.b32.xlu0 %v1687, 24
        %v1784 = vpop.permute.xlu0 %1783
        %1785 = vrot.lane.b32.xlu0 %v1688, 24
        %v1786 = vpop.permute.xlu0 %1785
        %1787 = vrot.lane.b32.xlu0 %v1689, 24
        %v1788 = vpop.permute.xlu0 %1787
        %1789 = vrot.lane.b32.xlu0 %v1690, 24
        %v1790 = vpop.permute.xlu0 %1789
        %1791 = vrot.lane.b32.xlu0 %v1691, 24
        %v1792 = vpop.permute.xlu0 %1791
        %1793 = vrot.lane.b32.xlu0 %v1692, 24
        %v1794 = vpop.permute.xlu0 %1793
        %1795 = vrot.lane.b32.xlu0 %v1693, 24
        %v1796 = vpop.permute.xlu0 %1795
        %1797 = vrot.lane.b32.xlu0 %v1694, 24
        %v1798 = vpop.permute.xlu0 %1797
        %1799 = vrot.lane.b32.xlu0 %v1695, 24
        %v1800 = vpop.permute.xlu0 %1799
        %1801 = vrot.lane.b32.xlu0 %v1696, 24
        %v1802 = vpop.permute.xlu0 %1801
        %1803 = vrot.lane.b32.xlu0 %v1697, 24
        %v1804 = vpop.permute.xlu0 %1803
        %1805 = vrot.lane.b32.xlu0 %v1698, 24
        %v1806 = vpop.permute.xlu0 %1805
        %1807 = vrot.lane.b32.xlu0 %v1699, 24
        %v1808 = vpop.permute.xlu0 %1807
        %1809 = vrot.lane.b32.xlu0 %v1700, 24
        %v1810 = vpop.permute.xlu0 %1809
        %1811 = vrot.lane.b32.xlu0 %v1701, 24
        %v1812 = vpop.permute.xlu0 %1811
        %vm1850 = vcmask 228548
        %1851 = vst.msk [vmem:[#allocation2 - $0x4] sm:$0xf0] %vm1850, %v1740
        %vm1852 = vcmask 228544
        %1853 = vst.msk [vmem:[#allocation2 + $0x4] sm:$0xff] %vm1852, %v1742
        %1854 = vst.msk [vmem:[#allocation2 + $0xc] sm:$0xff] %vm1852, %v1744
        %1855 = vst.msk [vmem:[#allocation2 + $0x14] sm:$0xff] %vm1852, %v1746
        %1856 = vst.msk [vmem:[#allocation2 + $0x1c] sm:$0xff] %vm1852, %v1748
        %1857 = vst.msk [vmem:[#allocation2 + $0x24] sm:$0xff] %vm1852, %v1750
        %1858 = vst.msk [vmem:[#allocation2 + $0x2c] sm:$0xff] %vm1852, %v1752
        %1859 = vst.msk [vmem:[#allocation2 + $0x34] sm:$0xff] %vm1852, %v1754
        %1860 = vst.msk [vmem:[#allocation2 + $0x3c] sm:$0xff] %vm1852, %v1756
        %1861 = vst.msk [vmem:[#allocation2 + $0x44] sm:$0xff] %vm1852, %v1758
        %1862 = vst.msk [vmem:[#allocation2 + $0x4c] sm:$0xff] %vm1852, %v1760
        %1863 = vst.msk [vmem:[#allocation2 + $0x54] sm:$0xff] %vm1852, %v1762
        %1864 = vst.msk [vmem:[#allocation2 + $0x5c] sm:$0xff] %vm1852, %v1764
        %1865 = vst.msk [vmem:[#allocation2 + $0x64] sm:$0xff] %vm1852, %v1766
        %1866 = vst.msk [vmem:[#allocation2 + $0x6c] sm:$0xff] %vm1852, %v1768
        %1867 = vst.msk [vmem:[#allocation2 + $0x74] sm:$0xff] %vm1852, %v1770
        %1868 = vst.msk [vmem:[#allocation2 + $0x7c] sm:$0xff] %vm1852, %v1772
        %1869 = vst.msk [vmem:[#allocation2 + $0x84] sm:$0xff] %vm1852, %v1774
        %1870 = vst.msk [vmem:[#allocation2 + $0x8c] sm:$0xff] %vm1852, %v1776
        %1871 = vst.msk [vmem:[#allocation2 + $0x94] sm:$0xff] %vm1852, %v1778
        %1872 = vst.msk [vmem:[#allocation2 + $0x9c] sm:$0xff] %vm1852, %v1780
        %1873 = vst.msk [vmem:[#allocation2 + $0xa4] sm:$0xff] %vm1852, %v1782
        %1874 = vst.msk [vmem:[#allocation2 + $0xac] sm:$0xff] %vm1852, %v1784
        %1875 = vst.msk [vmem:[#allocation2 + $0xb4] sm:$0xff] %vm1852, %v1786
        %1876 = vst.msk [vmem:[#allocation2 + $0xbc] sm:$0xff] %vm1852, %v1788
        %1877 = vst.msk [vmem:[#allocation2 + $0xc4] sm:$0xff] %vm1852, %v1790
        %1878 = vst.msk [vmem:[#allocation2 + $0xcc] sm:$0xff] %vm1852, %v1792
        %1879 = vst.msk [vmem:[#allocation2 + $0xd4] sm:$0xff] %vm1852, %v1794
        %1880 = vst.msk [vmem:[#allocation2 + $0xdc] sm:$0xff] %vm1852, %v1796
        %1881 = vst.msk [vmem:[#allocation2 + $0xe4] sm:$0xff] %vm1852, %v1798
        %1882 = vst.msk [vmem:[#allocation2 + $0xec] sm:$0xff] %vm1852, %v1800
        %1883 = vst.msk [vmem:[#allocation2 + $0xf4] sm:$0xff] %vm1852, %v1802
        %1884 = vst.msk [vmem:[#allocation2 + $0xfc] sm:$0xff] %vm1852, %v1804
        %1885 = vst.msk [vmem:[#allocation2 + $0x104] sm:$0xff] %vm1852, %v1806
        %1886 = vst.msk [vmem:[#allocation2 + $0x10c] sm:$0xff] %vm1852, %v1808
        %1887 = vst.msk [vmem:[#allocation2 + $0x114] sm:$0xff] %vm1852, %v1810
        %vm1888 = vcmask 224448
        %1889 = vst.msk [vmem:[#allocation2 + $0x11c] sm:$0xf] %vm1888, %v1812
        %v1890 = vld [vmem:[%s194 + $0x10] sm:$0xc]
        %v1891 = vld [vmem:[%s194 + $0x14] sm:$0xf]
        %v1892 = vld [vmem:[%s194 + $0x18] sm:$0xf]
        %v1893 = vld [vmem:[%s194 + $0x1c] sm:$0xf]
        %v1894 = vld [vmem:[%s194 + $0x20] sm:$0xf]
        %v1895 = vld [vmem:[%s194 + $0x24] sm:$0xf]
        %v1896 = vld [vmem:[%s194 + $0x28] sm:$0xf]
        %v1897 = vld [vmem:[%s194 + $0x2c] sm:$0xf]
        %v1898 = vld [vmem:[%s194 + $0x30] sm:$0xf]
        %v1899 = vld [vmem:[%s194 + $0x34] sm:$0xf]
        %v1900 = vld [vmem:[%s194 + $0x38] sm:$0xf]
        %v1901 = vld [vmem:[%s194 + $0x3c] sm:$0xf]
        %v1902 = vld [vmem:[%s194 + $0x40] sm:$0xf]
        %v1903 = vld [vmem:[%s194 + $0x44] sm:$0xf]
        %v1904 = vld [vmem:[%s194 + $0x48] sm:$0xf]
        %v1905 = vld [vmem:[%s194 + $0x4c] sm:$0xf]
        %v1906 = vld [vmem:[%s194 + $0x50] sm:$0xf]
        %v1907 = vld [vmem:[%s194 + $0x54] sm:$0xf]
        %v1908 = vld [vmem:[%s194 + $0x58] sm:$0xf]
        %v1909 = vld [vmem:[%s194 + $0x5c] sm:$0xf]
        %v1910 = vld [vmem:[%s194 + $0x60] sm:$0xf]
        %v1911 = vld [vmem:[%s194 + $0x64] sm:$0xf]
        %v1912 = vld [vmem:[%s194 + $0x68] sm:$0xf]
        %v1913 = vld [vmem:[%s194 + $0x6c] sm:$0xf]
        %v1914 = vld [vmem:[%s194 + $0x70] sm:$0xf]
        %v1915 = vld [vmem:[%s194 + $0x74] sm:$0xf]
        %v1916 = vld [vmem:[%s194 + $0x78] sm:$0xf]
        %v1917 = vld [vmem:[%s194 + $0x7c] sm:$0xf]
        %v1918 = vld [vmem:[%s194 + $0x80] sm:$0xf]
        %v1919 = vld [vmem:[%s194 + $0x84] sm:$0xf]
        %v1920 = vld [vmem:[%s194 + $0x88] sm:$0xf]
        %v1921 = vld [vmem:[%s194 + $0x8c] sm:$0xf]
        %v1922 = vld [vmem:[%s194 + $0x90] sm:$0xf]
        %v1923 = vld [vmem:[%s194 + $0x94] sm:$0xf]
        %v1924 = vld [vmem:[%s194 + $0x98] sm:$0xf]
        %v1925 = vld [vmem:[%s194 + $0x9c] sm:$0xf]
        %v1926 = vld [vmem:[%s194 + $0xa0] sm:$0x7]
        %v1927 = vunpack.c.l.bf16 %v1890
        %v1928 = vunpack.c.l.bf16 %v1891
        %v1929 = vunpack.c.l.bf16 %v1892
        %v1930 = vunpack.c.l.bf16 %v1893
        %v1931 = vunpack.c.l.bf16 %v1894
        %v1932 = vunpack.c.l.bf16 %v1895
        %v1933 = vunpack.c.l.bf16 %v1896
        %v1934 = vunpack.c.l.bf16 %v1897
        %v1935 = vunpack.c.l.bf16 %v1898
        %v1936 = vunpack.c.l.bf16 %v1899
        %v1937 = vunpack.c.l.bf16 %v1900
        %v1938 = vunpack.c.l.bf16 %v1901
        %v1939 = vunpack.c.l.bf16 %v1902
        %v1940 = vunpack.c.l.bf16 %v1903
        %v1941 = vunpack.c.l.bf16 %v1904
        %v1942 = vunpack.c.l.bf16 %v1905
        %v1943 = vunpack.c.l.bf16 %v1906
        %v1944 = vunpack.c.l.bf16 %v1907
        %v1945 = vunpack.c.l.bf16 %v1908
        %v1946 = vunpack.c.l.bf16 %v1909
        %v1947 = vunpack.c.l.bf16 %v1910
        %v1948 = vunpack.c.l.bf16 %v1911
        %v1949 = vunpack.c.l.bf16 %v1912
        %v1950 = vunpack.c.l.bf16 %v1913
        %v1951 = vunpack.c.l.bf16 %v1914
        %v1952 = vunpack.c.l.bf16 %v1915
        %v1953 = vunpack.c.l.bf16 %v1916
        %v1954 = vunpack.c.l.bf16 %v1917
        %v1955 = vunpack.c.l.bf16 %v1918
        %v1956 = vunpack.c.l.bf16 %v1919
        %v1957 = vunpack.c.l.bf16 %v1920
        %v1958 = vunpack.c.l.bf16 %v1921
        %v1959 = vunpack.c.l.bf16 %v1922
        %v1960 = vunpack.c.l.bf16 %v1923
        %v1961 = vunpack.c.l.bf16 %v1924
        %v1962 = vunpack.c.l.bf16 %v1925
        %v1963 = vunpack.c.l.bf16 %v1926
        %2001 = vrot.lane.b32.xlu0 %v1927, 28
        %v2002 = vpop.permute.xlu0 %2001
        %2003 = vrot.lane.b32.xlu0 %v1928, 28
        %v2004 = vpop.permute.xlu0 %2003
        %2005 = vrot.lane.b32.xlu0 %v1929, 28
        %v2006 = vpop.permute.xlu0 %2005
        %2007 = vrot.lane.b32.xlu0 %v1930, 28
        %v2008 = vpop.permute.xlu0 %2007
        %2009 = vrot.lane.b32.xlu0 %v1931, 28
        %v2010 = vpop.permute.xlu0 %2009
        %2011 = vrot.lane.b32.xlu0 %v1932, 28
        %v2012 = vpop.permute.xlu0 %2011
        %2013 = vrot.lane.b32.xlu0 %v1933, 28
        %v2014 = vpop.permute.xlu0 %2013
        %2015 = vrot.lane.b32.xlu0 %v1934, 28
        %v2016 = vpop.permute.xlu0 %2015
        %2017 = vrot.lane.b32.xlu0 %v1935, 28
        %v2018 = vpop.permute.xlu0 %2017
        %2019 = vrot.lane.b32.xlu0 %v1936, 28
        %v2020 = vpop.permute.xlu0 %2019
        %2021 = vrot.lane.b32.xlu0 %v1937, 28
        %v2022 = vpop.permute.xlu0 %2021
        %2023 = vrot.lane.b32.xlu0 %v1938, 28
        %v2024 = vpop.permute.xlu0 %2023
        %2025 = vrot.lane.b32.xlu0 %v1939, 28
        %v2026 = vpop.permute.xlu0 %2025
        %2027 = vrot.lane.b32.xlu0 %v1940, 28
        %v2028 = vpop.permute.xlu0 %2027
        %2029 = vrot.lane.b32.xlu0 %v1941, 28
        %v2030 = vpop.permute.xlu0 %2029
        %2031 = vrot.lane.b32.xlu0 %v1942, 28
        %v2032 = vpop.permute.xlu0 %2031
        %2033 = vrot.lane.b32.xlu0 %v1943, 28
        %v2034 = vpop.permute.xlu0 %2033
        %2035 = vrot.lane.b32.xlu0 %v1944, 28
        %v2036 = vpop.permute.xlu0 %2035
        %2037 = vrot.lane.b32.xlu0 %v1945, 28
        %v2038 = vpop.permute.xlu0 %2037
        %2039 = vrot.lane.b32.xlu0 %v1946, 28
        %v2040 = vpop.permute.xlu0 %2039
        %2041 = vrot.lane.b32.xlu0 %v1947, 28
        %v2042 = vpop.permute.xlu0 %2041
        %2043 = vrot.lane.b32.xlu0 %v1948, 28
        %v2044 = vpop.permute.xlu0 %2043
        %2045 = vrot.lane.b32.xlu0 %v1949, 28
        %v2046 = vpop.permute.xlu0 %2045
        %2047 = vrot.lane.b32.xlu0 %v1950, 28
        %v2048 = vpop.permute.xlu0 %2047
        %2049 = vrot.lane.b32.xlu0 %v1951, 28
        %v2050 = vpop.permute.xlu0 %2049
        %2051 = vrot.lane.b32.xlu0 %v1952, 28
        %v2052 = vpop.permute.xlu0 %2051
        %2053 = vrot.lane.b32.xlu0 %v1953, 28
        %v2054 = vpop.permute.xlu0 %2053
        %2055 = vrot.lane.b32.xlu0 %v1954, 28
        %v2056 = vpop.permute.xlu0 %2055
        %2057 = vrot.lane.b32.xlu0 %v1955, 28
        %v2058 = vpop.permute.xlu0 %2057
        %2059 = vrot.lane.b32.xlu0 %v1956, 28
        %v2060 = vpop.permute.xlu0 %2059
        %2061 = vrot.lane.b32.xlu0 %v1957, 28
        %v2062 = vpop.permute.xlu0 %2061
        %2063 = vrot.lane.b32.xlu0 %v1958, 28
        %v2064 = vpop.permute.xlu0 %2063
        %2065 = vrot.lane.b32.xlu0 %v1959, 28
        %v2066 = vpop.permute.xlu0 %2065
        %2067 = vrot.lane.b32.xlu0 %v1960, 28
        %v2068 = vpop.permute.xlu0 %2067
        %2069 = vrot.lane.b32.xlu0 %v1961, 28
        %v2070 = vpop.permute.xlu0 %2069
        %2071 = vrot.lane.b32.xlu0 %v1962, 28
        %v2072 = vpop.permute.xlu0 %2071
        %2073 = vrot.lane.b32.xlu0 %v1963, 28
        %v2074 = vpop.permute.xlu0 %2073
        %vm2112 = vcmask 261349
        %2113 = vst.msk [vmem:[#allocation2 - $0x5] sm:$0xe0] %vm2112, %v2002
        %vm2114 = vcmask 261344
        %2115 = vst.msk [vmem:[#allocation2 + $0x3] sm:$0xff] %vm2114, %v2004
        %2116 = vst.msk [vmem:[#allocation2 + $0xb] sm:$0xff] %vm2114, %v2006
        %2117 = vst.msk [vmem:[#allocation2 + $0x13] sm:$0xff] %vm2114, %v2008
        %2118 = vst.msk [vmem:[#allocation2 + $0x1b] sm:$0xff] %vm2114, %v2010
        %2119 = vst.msk [vmem:[#allocation2 + $0x23] sm:$0xff] %vm2114, %v2012
        %2120 = vst.msk [vmem:[#allocation2 + $0x2b] sm:$0xff] %vm2114, %v2014
        %2121 = vst.msk [vmem:[#allocation2 + $0x33] sm:$0xff] %vm2114, %v2016
        %2122 = vst.msk [vmem:[#allocation2 + $0x3b] sm:$0xff] %vm2114, %v2018
        %2123 = vst.msk [vmem:[#allocation2 + $0x43] sm:$0xff] %vm2114, %v2020
        %2124 = vst.msk [vmem:[#allocation2 + $0x4b] sm:$0xff] %vm2114, %v2022
        %2125 = vst.msk [vmem:[#allocation2 + $0x53] sm:$0xff] %vm2114, %v2024
        %2126 = vst.msk [vmem:[#allocation2 + $0x5b] sm:$0xff] %vm2114, %v2026
        %2127 = vst.msk [vmem:[#allocation2 + $0x63] sm:$0xff] %vm2114, %v2028
        %2128 = vst.msk [vmem:[#allocation2 + $0x6b] sm:$0xff] %vm2114, %v2030
        %2129 = vst.msk [vmem:[#allocation2 + $0x73] sm:$0xff] %vm2114, %v2032
        %2130 = vst.msk [vmem:[#allocation2 + $0x7b] sm:$0xff] %vm2114, %v2034
        %2131 = vst.msk [vmem:[#allocation2 + $0x83] sm:$0xff] %vm2114, %v2036
        %2132 = vst.msk [vmem:[#allocation2 + $0x8b] sm:$0xff] %vm2114, %v2038
        %2133 = vst.msk [vmem:[#allocation2 + $0x93] sm:$0xff] %vm2114, %v2040
        %2134 = vst.msk [vmem:[#allocation2 + $0x9b] sm:$0xff] %vm2114, %v2042
        %2135 = vst.msk [vmem:[#allocation2 + $0xa3] sm:$0xff] %vm2114, %v2044
        %2136 = vst.msk [vmem:[#allocation2 + $0xab] sm:$0xff] %vm2114, %v2046
        %2137 = vst.msk [vmem:[#allocation2 + $0xb3] sm:$0xff] %vm2114, %v2048
        %2138 = vst.msk [vmem:[#allocation2 + $0xbb] sm:$0xff] %vm2114, %v2050
        %2139 = vst.msk [vmem:[#allocation2 + $0xc3] sm:$0xff] %vm2114, %v2052
        %2140 = vst.msk [vmem:[#allocation2 + $0xcb] sm:$0xff] %vm2114, %v2054
        %2141 = vst.msk [vmem:[#allocation2 + $0xd3] sm:$0xff] %vm2114, %v2056
        %2142 = vst.msk [vmem:[#allocation2 + $0xdb] sm:$0xff] %vm2114, %v2058
        %2143 = vst.msk [vmem:[#allocation2 + $0xe3] sm:$0xff] %vm2114, %v2060
        %2144 = vst.msk [vmem:[#allocation2 + $0xeb] sm:$0xff] %vm2114, %v2062
        %2145 = vst.msk [vmem:[#allocation2 + $0xf3] sm:$0xff] %vm2114, %v2064
        %2146 = vst.msk [vmem:[#allocation2 + $0xfb] sm:$0xff] %vm2114, %v2066
        %2147 = vst.msk [vmem:[#allocation2 + $0x103] sm:$0xff] %vm2114, %v2068
        %2148 = vst.msk [vmem:[#allocation2 + $0x10b] sm:$0xff] %vm2114, %v2070
        %2149 = vst.msk [vmem:[#allocation2 + $0x113] sm:$0xff] %vm2114, %v2072
        %vm2150 = vcmask 258272
        %2151 = vst.msk [vmem:[#allocation2 + $0x11b] sm:$0x1f] %vm2150, %v2074
        %v2152 = vld [vmem:[%s194 + $0x10] sm:$0x8]
        %v2153 = vld [vmem:[%s194 + $0x14] sm:$0xf]
        %v2154 = vld [vmem:[%s194 + $0x18] sm:$0xf]
        %v2155 = vld [vmem:[%s194 + $0x1c] sm:$0xf]
        %v2156 = vld [vmem:[%s194 + $0x20] sm:$0xf]
        %v2157 = vld [vmem:[%s194 + $0x24] sm:$0xf]
        %v2158 = vld [vmem:[%s194 + $0x28] sm:$0xf]
        %v2159 = vld [vmem:[%s194 + $0x2c] sm:$0xf]
        %v2160 = vld [vmem:[%s194 + $0x30] sm:$0xf]
        %v2161 = vld [vmem:[%s194 + $0x34] sm:$0xf]
        %v2162 = vld [vmem:[%s194 + $0x38] sm:$0xf]
        %v2163 = vld [vmem:[%s194 + $0x3c] sm:$0xf]
        %v2164 = vld [vmem:[%s194 + $0x40] sm:$0xf]
        %v2165 = vld [vmem:[%s194 + $0x44] sm:$0xf]
        %v2166 = vld [vmem:[%s194 + $0x48] sm:$0xf]
        %v2167 = vld [vmem:[%s194 + $0x4c] sm:$0xf]
        %v2168 = vld [vmem:[%s194 + $0x50] sm:$0xf]
        %v2169 = vld [vmem:[%s194 + $0x54] sm:$0xf]
        %v2170 = vld [vmem:[%s194 + $0x58] sm:$0xf]
        %v2171 = vld [vmem:[%s194 + $0x5c] sm:$0xf]
        %v2172 = vld [vmem:[%s194 + $0x60] sm:$0xf]
        %v2173 = vld [vmem:[%s194 + $0x64] sm:$0xf]
        %v2174 = vld [vmem:[%s194 + $0x68] sm:$0xf]
        %v2175 = vld [vmem:[%s194 + $0x6c] sm:$0xf]
        %v2176 = vld [vmem:[%s194 + $0x70] sm:$0xf]
        %v2177 = vld [vmem:[%s194 + $0x74] sm:$0xf]
        %v2178 = vld [vmem:[%s194 + $0x78] sm:$0xf]
        %v2179 = vld [vmem:[%s194 + $0x7c] sm:$0xf]
        %v2180 = vld [vmem:[%s194 + $0x80] sm:$0xf]
        %v2181 = vld [vmem:[%s194 + $0x84] sm:$0xf]
        %v2182 = vld [vmem:[%s194 + $0x88] sm:$0xf]
        %v2183 = vld [vmem:[%s194 + $0x8c] sm:$0xf]
        %v2184 = vld [vmem:[%s194 + $0x90] sm:$0xf]
        %v2185 = vld [vmem:[%s194 + $0x94] sm:$0xf]
        %v2186 = vld [vmem:[%s194 + $0x98] sm:$0xf]
        %v2187 = vld [vmem:[%s194 + $0x9c] sm:$0xf]
        %v2188 = vld [vmem:[%s194 + $0xa0] sm:$0x7]
        %v2189 = vunpack.c.l.bf16 %v2152
        %v2190 = vunpack.c.l.bf16 %v2153
        %v2191 = vunpack.c.l.bf16 %v2154
        %v2192 = vunpack.c.l.bf16 %v2155
        %v2193 = vunpack.c.l.bf16 %v2156
        %v2194 = vunpack.c.l.bf16 %v2157
        %v2195 = vunpack.c.l.bf16 %v2158
        %v2196 = vunpack.c.l.bf16 %v2159
        %v2197 = vunpack.c.l.bf16 %v2160
        %v2198 = vunpack.c.l.bf16 %v2161
        %v2199 = vunpack.c.l.bf16 %v2162
        %v2200 = vunpack.c.l.bf16 %v2163
        %v2201 = vunpack.c.l.bf16 %v2164
        %v2202 = vunpack.c.l.bf16 %v2165
        %v2203 = vunpack.c.l.bf16 %v2166
        %v2204 = vunpack.c.l.bf16 %v2167
        %v2205 = vunpack.c.l.bf16 %v2168
        %v2206 = vunpack.c.l.bf16 %v2169
        %v2207 = vunpack.c.l.bf16 %v2170
        %v2208 = vunpack.c.l.bf16 %v2171
        %v2209 = vunpack.c.l.bf16 %v2172
        %v2210 = vunpack.c.l.bf16 %v2173
        %v2211 = vunpack.c.l.bf16 %v2174
        %v2212 = vunpack.c.l.bf16 %v2175
        %v2213 = vunpack.c.l.bf16 %v2176
        %v2214 = vunpack.c.l.bf16 %v2177
        %v2215 = vunpack.c.l.bf16 %v2178
        %v2216 = vunpack.c.l.bf16 %v2179
        %v2217 = vunpack.c.l.bf16 %v2180
        %v2218 = vunpack.c.l.bf16 %v2181
        %v2219 = vunpack.c.l.bf16 %v2182
        %v2220 = vunpack.c.l.bf16 %v2183
        %v2221 = vunpack.c.l.bf16 %v2184
        %v2222 = vunpack.c.l.bf16 %v2185
        %v2223 = vunpack.c.l.bf16 %v2186
        %v2224 = vunpack.c.l.bf16 %v2187
        %v2225 = vunpack.c.l.bf16 %v2188
        %2263 = vrot.lane.b32.xlu0 %v2189, 32
        %v2264 = vpop.permute.xlu0 %2263
        %2265 = vrot.lane.b32.xlu0 %v2190, 32
        %v2266 = vpop.permute.xlu0 %2265
        %2267 = vrot.lane.b32.xlu0 %v2191, 32
        %v2268 = vpop.permute.xlu0 %2267
        %2269 = vrot.lane.b32.xlu0 %v2192, 32
        %v2270 = vpop.permute.xlu0 %2269
        %2271 = vrot.lane.b32.xlu0 %v2193, 32
        %v2272 = vpop.permute.xlu0 %2271
        %2273 = vrot.lane.b32.xlu0 %v2194, 32
        %v2274 = vpop.permute.xlu0 %2273
        %2275 = vrot.lane.b32.xlu0 %v2195, 32
        %v2276 = vpop.permute.xlu0 %2275
        %2277 = vrot.lane.b32.xlu0 %v2196, 32
        %v2278 = vpop.permute.xlu0 %2277
        %2279 = vrot.lane.b32.xlu0 %v2197, 32
        %v2280 = vpop.permute.xlu0 %2279
        %2281 = vrot.lane.b32.xlu0 %v2198, 32
        %v2282 = vpop.permute.xlu0 %2281
        %2283 = vrot.lane.b32.xlu0 %v2199, 32
        %v2284 = vpop.permute.xlu0 %2283
        %2285 = vrot.lane.b32.xlu0 %v2200, 32
        %v2286 = vpop.permute.xlu0 %2285
        %2287 = vrot.lane.b32.xlu0 %v2201, 32
        %v2288 = vpop.permute.xlu0 %2287
        %2289 = vrot.lane.b32.xlu0 %v2202, 32
        %v2290 = vpop.permute.xlu0 %2289
        %2291 = vrot.lane.b32.xlu0 %v2203, 32
        %v2292 = vpop.permute.xlu0 %2291
        %2293 = vrot.lane.b32.xlu0 %v2204, 32
        %v2294 = vpop.permute.xlu0 %2293
        %2295 = vrot.lane.b32.xlu0 %v2205, 32
        %v2296 = vpop.permute.xlu0 %2295
        %2297 = vrot.lane.b32.xlu0 %v2206, 32
        %v2298 = vpop.permute.xlu0 %2297
        %2299 = vrot.lane.b32.xlu0 %v2207, 32
        %v2300 = vpop.permute.xlu0 %2299
        %2301 = vrot.lane.b32.xlu0 %v2208, 32
        %v2302 = vpop.permute.xlu0 %2301
        %2303 = vrot.lane.b32.xlu0 %v2209, 32
        %v2304 = vpop.permute.xlu0 %2303
        %2305 = vrot.lane.b32.xlu0 %v2210, 32
        %v2306 = vpop.permute.xlu0 %2305
        %2307 = vrot.lane.b32.xlu0 %v2211, 32
        %v2308 = vpop.permute.xlu0 %2307
        %2309 = vrot.lane.b32.xlu0 %v2212, 32
        %v2310 = vpop.permute.xlu0 %2309
        %2311 = vrot.lane.b32.xlu0 %v2213, 32
        %v2312 = vpop.permute.xlu0 %2311
        %2313 = vrot.lane.b32.xlu0 %v2214, 32
        %v2314 = vpop.permute.xlu0 %2313
        %2315 = vrot.lane.b32.xlu0 %v2215, 32
        %v2316 = vpop.permute.xlu0 %2315
        %2317 = vrot.lane.b32.xlu0 %v2216, 32
        %v2318 = vpop.permute.xlu0 %2317
        %2319 = vrot.lane.b32.xlu0 %v2217, 32
        %v2320 = vpop.permute.xlu0 %2319
        %2321 = vrot.lane.b32.xlu0 %v2218, 32
        %v2322 = vpop.permute.xlu0 %2321
        %2323 = vrot.lane.b32.xlu0 %v2219, 32
        %v2324 = vpop.permute.xlu0 %2323
        %2325 = vrot.lane.b32.xlu0 %v2220, 32
        %v2326 = vpop.permute.xlu0 %2325
        %2327 = vrot.lane.b32.xlu0 %v2221, 32
        %v2328 = vpop.permute.xlu0 %2327
        %2329 = vrot.lane.b32.xlu0 %v2222, 32
        %v2330 = vpop.permute.xlu0 %2329
        %2331 = vrot.lane.b32.xlu0 %v2223, 32
        %v2332 = vpop.permute.xlu0 %2331
        %2333 = vrot.lane.b32.xlu0 %v2224, 32
        %v2334 = vpop.permute.xlu0 %2333
        %2335 = vrot.lane.b32.xlu0 %v2225, 32
        %v2336 = vpop.permute.xlu0 %2335
        %vm2374 = vcmask 294150
        %2375 = vst.msk [vmem:[#allocation2 - $0x6] sm:$0xc0] %vm2374, %v2264
        %vm2376 = vcmask 294144
        %2377 = vst.msk [vmem:[#allocation2 + $0x2] sm:$0xff] %vm2376, %v2266
        %2378 = vst.msk [vmem:[#allocation2 + $0xa] sm:$0xff] %vm2376, %v2268
        %2379 = vst.msk [vmem:[#allocation2 + $0x12] sm:$0xff] %vm2376, %v2270
        %2380 = vst.msk [vmem:[#allocation2 + $0x1a] sm:$0xff] %vm2376, %v2272
        %2381 = vst.msk [vmem:[#allocation2 + $0x22] sm:$0xff] %vm2376, %v2274
        %2382 = vst.msk [vmem:[#allocation2 + $0x2a] sm:$0xff] %vm2376, %v2276
        %2383 = vst.msk [vmem:[#allocation2 + $0x32] sm:$0xff] %vm2376, %v2278
        %2384 = vst.msk [vmem:[#allocation2 + $0x3a] sm:$0xff] %vm2376, %v2280
        %2385 = vst.msk [vmem:[#allocation2 + $0x42] sm:$0xff] %vm2376, %v2282
        %2386 = vst.msk [vmem:[#allocation2 + $0x4a] sm:$0xff] %vm2376, %v2284
        %2387 = vst.msk [vmem:[#allocation2 + $0x52] sm:$0xff] %vm2376, %v2286
        %2388 = vst.msk [vmem:[#allocation2 + $0x5a] sm:$0xff] %vm2376, %v2288
        %2389 = vst.msk [vmem:[#allocation2 + $0x62] sm:$0xff] %vm2376, %v2290
        %2390 = vst.msk [vmem:[#allocation2 + $0x6a] sm:$0xff] %vm2376, %v2292
        %2391 = vst.msk [vmem:[#allocation2 + $0x72] sm:$0xff] %vm2376, %v2294
        %2392 = vst.msk [vmem:[#allocation2 + $0x7a] sm:$0xff] %vm2376, %v2296
        %2393 = vst.msk [vmem:[#allocation2 + $0x82] sm:$0xff] %vm2376, %v2298
        %2394 = vst.msk [vmem:[#allocation2 + $0x8a] sm:$0xff] %vm2376, %v2300
        %2395 = vst.msk [vmem:[#allocation2 + $0x92] sm:$0xff] %vm2376, %v2302
        %2396 = vst.msk [vmem:[#allocation2 + $0x9a] sm:$0xff] %vm2376, %v2304
        %2397 = vst.msk [vmem:[#allocation2 + $0xa2] sm:$0xff] %vm2376, %v2306
        %2398 = vst.msk [vmem:[#allocation2 + $0xaa] sm:$0xff] %vm2376, %v2308
        %2399 = vst.msk [vmem:[#allocation2 + $0xb2] sm:$0xff] %vm2376, %v2310
        %2400 = vst.msk [vmem:[#allocation2 + $0xba] sm:$0xff] %vm2376, %v2312
        %2401 = vst.msk [vmem:[#allocation2 + $0xc2] sm:$0xff] %vm2376, %v2314
        %2402 = vst.msk [vmem:[#allocation2 + $0xca] sm:$0xff] %vm2376, %v2316
        %2403 = vst.msk [vmem:[#allocation2 + $0xd2] sm:$0xff] %vm2376, %v2318
        %2404 = vst.msk [vmem:[#allocation2 + $0xda] sm:$0xff] %vm2376, %v2320
        %2405 = vst.msk [vmem:[#allocation2 + $0xe2] sm:$0xff] %vm2376, %v2322
        %2406 = vst.msk [vmem:[#allocation2 + $0xea] sm:$0xff] %vm2376, %v2324
        %2407 = vst.msk [vmem:[#allocation2 + $0xf2] sm:$0xff] %vm2376, %v2326
        %2408 = vst.msk [vmem:[#allocation2 + $0xfa] sm:$0xff] %vm2376, %v2328
        %2409 = vst.msk [vmem:[#allocation2 + $0x102] sm:$0xff] %vm2376, %v2330
        %2410 = vst.msk [vmem:[#allocation2 + $0x10a] sm:$0xff] %vm2376, %v2332
        %2411 = vst.msk [vmem:[#allocation2 + $0x112] sm:$0xff] %vm2376, %v2334
        %vm2412 = vcmask 292096
        %2413 = vst.msk [vmem:[#allocation2 + $0x11a] sm:$0x3f] %vm2412, %v2336
        %v2414 = vld [vmem:[#allocation2] sm:$0xff]
        %v2415 = vld [vmem:[#allocation2 + $0x8] sm:$0xff]
        %v2416 = vld [vmem:[#allocation2 + $0x10] sm:$0xff]
        %v2417 = vld [vmem:[#allocation2 + $0x18] sm:$0xff]
        %v2418 = vld [vmem:[#allocation2 + $0x20] sm:$0xff]
        %v2419 = vld [vmem:[#allocation2 + $0x28] sm:$0xff]
        %v2420 = vld [vmem:[#allocation2 + $0x30] sm:$0xff]
        %v2421 = vld [vmem:[#allocation2 + $0x38] sm:$0xff]
        %v2422 = vld [vmem:[#allocation2 + $0x40] sm:$0xff]
        %v2423 = vld [vmem:[#allocation2 + $0x48] sm:$0xff]
        %v2424 = vld [vmem:[#allocation2 + $0x50] sm:$0xff]
        %v2425 = vld [vmem:[#allocation2 + $0x58] sm:$0xff]
        %v2426 = vld [vmem:[#allocation2 + $0x60] sm:$0xff]
        %v2427 = vld [vmem:[#allocation2 + $0x68] sm:$0xff]
        %v2428 = vld [vmem:[#allocation2 + $0x70] sm:$0xff]
        %v2429 = vld [vmem:[#allocation2 + $0x78] sm:$0xff]
        %v2430 = vld [vmem:[#allocation2 + $0x80] sm:$0xff]
        %v2431 = vld [vmem:[#allocation2 + $0x88] sm:$0xff]
        %v2432 = vld [vmem:[#allocation2 + $0x90] sm:$0xff]
        %v2433 = vld [vmem:[#allocation2 + $0x98] sm:$0xff]
        %v2434 = vld [vmem:[#allocation2 + $0xa0] sm:$0xff]
        %v2435 = vld [vmem:[#allocation2 + $0xa8] sm:$0xff]
        %v2436 = vld [vmem:[#allocation2 + $0xb0] sm:$0xff]
        %v2437 = vld [vmem:[#allocation2 + $0xb8] sm:$0xff]
        %v2438 = vld [vmem:[#allocation2 + $0xc0] sm:$0xff]
        %v2439 = vld [vmem:[#allocation2 + $0xc8] sm:$0xff]
        %v2440 = vld [vmem:[#allocation2 + $0xd0] sm:$0xff]
        %v2441 = vld [vmem:[#allocation2 + $0xd8] sm:$0xff]
        %v2442 = vld [vmem:[#allocation2 + $0xe0] sm:$0xff]
        %v2443 = vld [vmem:[#allocation2 + $0xe8] sm:$0xff]
        %v2444 = vld [vmem:[#allocation2 + $0xf0] sm:$0xff]
        %v2445 = vld [vmem:[#allocation2 + $0xf8] sm:$0xff]
        %v2446 = vld [vmem:[#allocation2 + $0x100] sm:$0xff]
        %v2447 = vld [vmem:[#allocation2 + $0x108] sm:$0xff]
        %v2448 = vld [vmem:[#allocation2 + $0x110] sm:$0xff]
        %v2449 = vld [vmem:[#allocation2 + $0x118] sm:$0xff]
        %v2450 = vld [vmem:[#allocation2 + $0x120] sm:$0xff]
        %v2451 = vld [vmem:[#allocation2 + $0x128] sm:$0xff]
        %v2452 = vld [vmem:[#allocation2 + $0x130] sm:$0xff]
        %v2453 = vld [vmem:[#allocation2 + $0x138] sm:$0xff]
        %v2454 = vld [vmem:[#allocation2 + $0x140] sm:$0xff]
        %v2455 = vld [vmem:[#allocation2 + $0x148] sm:$0xff]
        %v2456 = vld [vmem:[#allocation2 + $0x150] sm:$0xff]
        %v2457 = vld [vmem:[#allocation2 + $0x158] sm:$0xff]
        %v2458 = vld [vmem:[#allocation2 + $0x160] sm:$0xff]
        %v2459 = vld [vmem:[#allocation2 + $0x168] sm:$0xff]
        %v2460 = vld [vmem:[#allocation2 + $0x170] sm:$0xff]
        %v2461 = vld [vmem:[#allocation2 + $0x178] sm:$0xff]
        %v2462 = vpack.c.bf16 %v2415, %v2414
        %v2463 = vpack.c.bf16 %v2417, %v2416
        %v2464 = vpack.c.bf16 %v2419, %v2418
        %v2465 = vpack.c.bf16 %v2421, %v2420
        %v2466 = vpack.c.bf16 %v2423, %v2422
        %v2467 = vpack.c.bf16 %v2425, %v2424
        %v2468 = vpack.c.bf16 %v2427, %v2426
        %v2469 = vpack.c.bf16 %v2429, %v2428
        %v2470 = vpack.c.bf16 %v2431, %v2430
        %v2471 = vpack.c.bf16 %v2433, %v2432
        %v2472 = vpack.c.bf16 %v2435, %v2434
        %v2473 = vpack.c.bf16 %v2437, %v2436
        %v2474 = vpack.c.bf16 %v2439, %v2438
        %v2475 = vpack.c.bf16 %v2441, %v2440
        %v2476 = vpack.c.bf16 %v2443, %v2442
        %v2477 = vpack.c.bf16 %v2445, %v2444
        %v2478 = vpack.c.bf16 %v2447, %v2446
        %v2479 = vpack.c.bf16 %v2449, %v2448
        %v2480 = vpack.c.bf16 %v2451, %v2450
        %v2481 = vpack.c.bf16 %v2453, %v2452
        %v2482 = vpack.c.bf16 %v2455, %v2454
        %v2483 = vpack.c.bf16 %v2457, %v2456
        %v2484 = vpack.c.bf16 %v2459, %v2458
        %v2485 = vpack.c.bf16 %v2461, %v2460
        %v2486 = vld [vmem:[%s1] sm:$0xf]
        %v2487 = vld [vmem:[%s1 + $0x4] sm:$0xf]
        %v2488 = vld [vmem:[%s1 + $0x8] sm:$0xf]
        %v2489 = vld [vmem:[%s1 + $0xc] sm:$0xf]
        %v2490 = vld [vmem:[%s1 + $0x10] sm:$0x3]
        %v2491 = vld [vmem:[%s2] sm:$0x1]
        %v2493 = vperm.slane %v2491, 0
        %v2500 = vunpack.c.l.b16 %v2486
        %v2501 = vunpack.c.l.b16 %v2487
        %v2502 = vunpack.c.l.b16 %v2488
        %v2503 = vunpack.c.l.b16 %v2489
        %v2504 = vunpack.c.l.b16 %v2490
        %v2505 = vpack.c.b16 %v2501, %v2500
        %v2506 = vpack.c.b16 %v2503, %v2502
        %v2507 = vpack.c.b16 %v2504, %v2504
        %v2511 = vsel %vm196, %v2462, 0
        %v2514 = vsel %vm196, %v2463, 0
        %v2517 = vsel %vm196, %v2464, 0
        %v2520 = vsel %vm196, %v2465, 0
        %v2523 = vsel %vm196, %v2466, 0
        %v2526 = vsel %vm196, %v2467, 0
        %v2529 = vsel %vm196, %v2468, 0
        %v2532 = vsel %vm196, %v2469, 0
        %v2535 = vsel %vm196, %v2470, 0
        %v2538 = vsel %vm196, %v2471, 0
        %v2541 = vsel %vm196, %v2472, 0
        %v2544 = vsel %vm196, %v2473, 0
        %v2547 = vsel %vm196, %v2474, 0
        %v2550 = vsel %vm196, %v2475, 0
        %v2553 = vsel %vm196, %v2476, 0
        %v2556 = vsel %vm196, %v2477, 0
        %v2559 = vsel %vm196, %v2478, 0
        %v2562 = vsel %vm196, %v2479, 0
        %v2565 = vsel %vm196, %v2480, 0
        %v2568 = vsel %vm196, %v2481, 0
        %v2571 = vsel %vm196, %v2482, 0
        %v2574 = vsel %vm196, %v2483, 0
        %v2577 = vsel %vm196, %v2484, 0
        %v2580 = vsel %vm196, %v2485, 0
        %vm2582 = vcmask 1041408
        %v2584 = vsel %vm2582, %v2507, 0
        %2586 = vmatpush.bf16.msra.mxu0 0
        %2587 = vmatpush.bf16.msra.mxu0 0
        %2588 = vmatpush.bf16.msra.mxu0 0
        %2589 = vmatpush.bf16.msra.mxu0 0
        %2590 = vmatpush.bf16.msra.mxu0 0
        %2591 = vmatpush.bf16.msra.mxu0 %v2584
        %2592 = vmatpush.bf16.msra.mxu0 %v2506
        %2593 = vmatpush.bf16.msra.mxu0 %v2505
        %2594 = vmatmul.bf16.gmra.mxu0 %v2511
        %v2595 = vpop.f32.mrf.mxu0
        %v2596 = vadd.f32 %v2493, %v2595
        %v2597 = vpop.f32.mrf.mxu0
        %v2598 = vadd.f32 %v2493, %v2597
        %2599 = vmatmul.bf16.gmra.mxu0 %v2514
        %v2600 = vpop.f32.mrf.mxu0
        %v2601 = vadd.f32 %v2493, %v2600
        %v2602 = vpop.f32.mrf.mxu0
        %v2603 = vadd.f32 %v2493, %v2602
        %2604 = vmatmul.bf16.gmra.mxu0 %v2517
        %v2605 = vpop.f32.mrf.mxu0
        %v2606 = vadd.f32 %v2493, %v2605
        %v2607 = vpop.f32.mrf.mxu0
        %v2608 = vadd.f32 %v2493, %v2607
        %2609 = vmatmul.bf16.gmra.mxu0 %v2520
        %v2610 = vpop.f32.mrf.mxu0
        %v2611 = vadd.f32 %v2493, %v2610
        %v2612 = vpop.f32.mrf.mxu0
        %v2613 = vadd.f32 %v2493, %v2612
        %2614 = vmatmul.bf16.gmra.mxu0 %v2523
        %v2615 = vpop.f32.mrf.mxu0
        %v2616 = vadd.f32 %v2493, %v2615
        %v2617 = vpop.f32.mrf.mxu0
        %v2618 = vadd.f32 %v2493, %v2617
        %2619 = vmatmul.bf16.gmra.mxu0 %v2526
        %v2620 = vpop.f32.mrf.mxu0
        %v2621 = vadd.f32 %v2493, %v2620
        %v2622 = vpop.f32.mrf.mxu0
        %v2623 = vadd.f32 %v2493, %v2622
        %2624 = vmatmul.bf16.gmra.mxu0 %v2529
        %v2625 = vpop.f32.mrf.mxu0
        %v2626 = vadd.f32 %v2493, %v2625
        %v2627 = vpop.f32.mrf.mxu0
        %v2628 = vadd.f32 %v2493, %v2627
        %2629 = vmatmul.bf16.gmra.mxu0 %v2532
        %v2630 = vpop.f32.mrf.mxu0
        %v2631 = vadd.f32 %v2493, %v2630
        %v2632 = vpop.f32.mrf.mxu0
        %v2633 = vadd.f32 %v2493, %v2632
        %2634 = vmatmul.bf16.gmra.mxu0 %v2535
        %v2635 = vpop.f32.mrf.mxu0
        %v2636 = vadd.f32 %v2493, %v2635
        %v2637 = vpop.f32.mrf.mxu0
        %v2638 = vadd.f32 %v2493, %v2637
        %2639 = vmatmul.bf16.gmra.mxu0 %v2538
        %v2640 = vpop.f32.mrf.mxu0
        %v2641 = vadd.f32 %v2493, %v2640
        %v2642 = vpop.f32.mrf.mxu0
        %v2643 = vadd.f32 %v2493, %v2642
        %2644 = vmatmul.bf16.gmra.mxu0 %v2541
        %v2645 = vpop.f32.mrf.mxu0
        %v2646 = vadd.f32 %v2493, %v2645
        %v2647 = vpop.f32.mrf.mxu0
        %v2648 = vadd.f32 %v2493, %v2647
        %2649 = vmatmul.bf16.gmra.mxu0 %v2544
        %v2650 = vpop.f32.mrf.mxu0
        %v2651 = vadd.f32 %v2493, %v2650
        %v2652 = vpop.f32.mrf.mxu0
        %v2653 = vadd.f32 %v2493, %v2652
        %2654 = vmatmul.bf16.gmra.mxu0 %v2547
        %v2655 = vpop.f32.mrf.mxu0
        %v2656 = vadd.f32 %v2493, %v2655
        %v2657 = vpop.f32.mrf.mxu0
        %v2658 = vadd.f32 %v2493, %v2657
        %2659 = vmatmul.bf16.gmra.mxu0 %v2550
        %v2660 = vpop.f32.mrf.mxu0
        %v2661 = vadd.f32 %v2493, %v2660
        %v2662 = vpop.f32.mrf.mxu0
        %v2663 = vadd.f32 %v2493, %v2662
        %2664 = vmatmul.bf16.gmra.mxu0 %v2553
        %v2665 = vpop.f32.mrf.mxu0
        %v2666 = vadd.f32 %v2493, %v2665
        %v2667 = vpop.f32.mrf.mxu0
        %v2668 = vadd.f32 %v2493, %v2667
        %2669 = vmatmul.bf16.gmra.mxu0 %v2556
        %v2670 = vpop.f32.mrf.mxu0
        %v2671 = vadd.f32 %v2493, %v2670
        %v2672 = vpop.f32.mrf.mxu0
        %v2673 = vadd.f32 %v2493, %v2672
        %2674 = vmatmul.bf16.gmra.mxu0 %v2559
        %v2675 = vpop.f32.mrf.mxu0
        %v2676 = vadd.f32 %v2493, %v2675
        %v2677 = vpop.f32.mrf.mxu0
        %v2678 = vadd.f32 %v2493, %v2677
        %2679 = vmatmul.bf16.gmra.mxu0 %v2562
        %v2680 = vpop.f32.mrf.mxu0
        %v2681 = vadd.f32 %v2493, %v2680
        %v2682 = vpop.f32.mrf.mxu0
        %v2683 = vadd.f32 %v2493, %v2682
        %2684 = vmatmul.bf16.gmra.mxu0 %v2565
        %v2685 = vpop.f32.mrf.mxu0
        %v2686 = vadd.f32 %v2493, %v2685
        %v2687 = vpop.f32.mrf.mxu0
        %v2688 = vadd.f32 %v2493, %v2687
        %2689 = vmatmul.bf16.gmra.mxu0 %v2568
        %v2690 = vpop.f32.mrf.mxu0
        %v2691 = vadd.f32 %v2493, %v2690
        %v2692 = vpop.f32.mrf.mxu0
        %v2693 = vadd.f32 %v2493, %v2692
        %2694 = vmatmul.bf16.gmra.mxu0 %v2571
        %v2695 = vpop.f32.mrf.mxu0
        %v2696 = vadd.f32 %v2493, %v2695
        %v2697 = vpop.f32.mrf.mxu0
        %v2698 = vadd.f32 %v2493, %v2697
        %2699 = vmatmul.bf16.gmra.mxu0 %v2574
        %v2700 = vpop.f32.mrf.mxu0
        %v2701 = vadd.f32 %v2493, %v2700
        %v2702 = vpop.f32.mrf.mxu0
        %v2703 = vadd.f32 %v2493, %v2702
        %2704 = vmatmul.bf16.gmra.mxu0 %v2577
        %v2705 = vpop.f32.mrf.mxu0
        %v2706 = vadd.f32 %v2493, %v2705
        %v2707 = vpop.f32.mrf.mxu0
        %v2708 = vadd.f32 %v2493, %v2707
        %2709 = vmatmul.bf16.gmra.mxu0 %v2580
        %v2710 = vpop.f32.mrf.mxu0
        %v2711 = vadd.f32 %v2493, %v2710
        %v2712 = vpop.f32.mrf.mxu0
        %v2713 = vadd.f32 %v2493, %v2712
        %2714 = vdwg.mxu0
        %v2715 = vmax.f32 %v2596, 0.0
        %v2716 = vmax.f32 %v2598, 0.0
        %v2717 = vmax.f32 %v2601, 0.0
        %v2718 = vmax.f32 %v2603, 0.0
        %v2719 = vmax.f32 %v2606, 0.0
        %v2720 = vmax.f32 %v2608, 0.0
        %v2721 = vmax.f32 %v2611, 0.0
        %v2722 = vmax.f32 %v2613, 0.0
        %v2723 = vmax.f32 %v2616, 0.0
        %v2724 = vmax.f32 %v2618, 0.0
        %v2725 = vmax.f32 %v2621, 0.0
        %v2726 = vmax.f32 %v2623, 0.0
        %v2727 = vmax.f32 %v2626, 0.0
        %v2728 = vmax.f32 %v2628, 0.0
        %v2729 = vmax.f32 %v2631, 0.0
        %v2730 = vmax.f32 %v2633, 0.0
        %v2731 = vmax.f32 %v2636, 0.0
        %v2732 = vmax.f32 %v2638, 0.0
        %v2733 = vmax.f32 %v2641, 0.0
        %v2734 = vmax.f32 %v2643, 0.0
        %v2735 = vmax.f32 %v2646, 0.0
        %v2736 = vmax.f32 %v2648, 0.0
        %v2737 = vmax.f32 %v2651, 0.0
        %v2738 = vmax.f32 %v2653, 0.0
        %v2739 = vmax.f32 %v2656, 0.0
        %v2740 = vmax.f32 %v2658, 0.0
        %v2741 = vmax.f32 %v2661, 0.0
        %v2742 = vmax.f32 %v2663, 0.0
        %v2743 = vmax.f32 %v2666, 0.0
        %v2744 = vmax.f32 %v2668, 0.0
        %v2745 = vmax.f32 %v2671, 0.0
        %v2746 = vmax.f32 %v2673, 0.0
        %v2747 = vmax.f32 %v2676, 0.0
        %v2748 = vmax.f32 %v2678, 0.0
        %v2749 = vmax.f32 %v2681, 0.0
        %v2750 = vmax.f32 %v2683, 0.0
        %v2751 = vmax.f32 %v2686, 0.0
        %v2752 = vmax.f32 %v2688, 0.0
        %v2753 = vmax.f32 %v2691, 0.0
        %v2754 = vmax.f32 %v2693, 0.0
        %v2755 = vmax.f32 %v2696, 0.0
        %v2756 = vmax.f32 %v2698, 0.0
        %v2757 = vmax.f32 %v2701, 0.0
        %v2758 = vmax.f32 %v2703, 0.0
        %v2759 = vmax.f32 %v2706, 0.0
        %v2760 = vmax.f32 %v2708, 0.0
        %v2761 = vmax.f32 %v2711, 0.0
        %v2762 = vmax.f32 %v2713, 0.0
        %v2763 = vld [vmem:[%s3] sm:$0x7]
        %v2765 = vperm.slane %v2763, 0
        %v2766 = vperm.slane %v2763, 1
        %v2767 = vperm.slane %v2763, 2
        %2771 = vmatpush.msra.mxu0 %v2730
        %2772 = vmatpush.msra.mxu0 %v2729
        %2773 = vmatpush.msra.mxu0 %v2728
        %2774 = vmatpush.msra.mxu0 %v2727
        %2775 = vmatpush.msra.mxu0 %v2726
        %2776 = vmatpush.msra.mxu0 %v2725
        %2777 = vmatpush.msra.mxu0 %v2724
        %2778 = vmatpush.msra.mxu0 %v2723
        %2779 = vmatpush.msra.mxu0 %v2722
        %2780 = vmatpush.msra.mxu0 %v2721
        %2781 = vmatpush.msra.mxu0 %v2720
        %2782 = vmatpush.msra.mxu0 %v2719
        %2783 = vmatpush.msra.mxu0 %v2718
        %2784 = vmatpush.msra.mxu0 %v2717
        %2785 = vmatpush.msra.mxu0 %v2716
        %2786 = vmatpush.msra.mxu0 %v2715
        %2787 = vmatmul.f32.gmra.mxu0 %v2765
        %v2788 = vpop.f32.mrf.mxu0
        %v2789 = vadd.f32 0.0, %v2788
        %2790 = vdwg.mxu0
        %2791 = vmatpush.msra.mxu0 %v2746
        %2792 = vmatpush.msra.mxu0 %v2745
        %2793 = vmatpush.msra.mxu0 %v2744
        %2794 = vmatpush.msra.mxu0 %v2743
        %2795 = vmatpush.msra.mxu0 %v2742
        %2796 = vmatpush.msra.mxu0 %v2741
        %2797 = vmatpush.msra.mxu0 %v2740
        %2798 = vmatpush.msra.mxu0 %v2739
        %2799 = vmatpush.msra.mxu0 %v2738
        %2800 = vmatpush.msra.mxu0 %v2737
        %2801 = vmatpush.msra.mxu0 %v2736
        %2802 = vmatpush.msra.mxu0 %v2735
        %2803 = vmatpush.msra.mxu0 %v2734
        %2804 = vmatpush.msra.mxu0 %v2733
        %2805 = vmatpush.msra.mxu0 %v2732
        %2806 = vmatpush.msra.mxu0 %v2731
        %2807 = vmatmul.f32.gmra.mxu0 %v2766
        %v2808 = vpop.f32.mrf.mxu0
        %v2809 = vadd.f32 %v2789, %v2808
        %2810 = vdwg.mxu0
        %2811 = vmatpush.msra.mxu0 %v2762
        %2812 = vmatpush.msra.mxu0 %v2761
        %2813 = vmatpush.msra.mxu0 %v2760
        %2814 = vmatpush.msra.mxu0 %v2759
        %2815 = vmatpush.msra.mxu0 %v2758
        %2816 = vmatpush.msra.mxu0 %v2757
        %2817 = vmatpush.msra.mxu0 %v2756
        %2818 = vmatpush.msra.mxu0 %v2755
        %2819 = vmatpush.msra.mxu0 %v2754
        %2820 = vmatpush.msra.mxu0 %v2753
        %2821 = vmatpush.msra.mxu0 %v2752
        %2822 = vmatpush.msra.mxu0 %v2751
        %2823 = vmatpush.msra.mxu0 %v2750
        %2824 = vmatpush.msra.mxu0 %v2749
        %2825 = vmatpush.msra.mxu0 %v2748
        %2826 = vmatpush.msra.mxu0 %v2747
        %2827 = vmatmul.f32.gmra.mxu0 %v2767
        %v2828 = vpop.f32.mrf.mxu0
        %v2829 = vadd.f32 %v2809, %v2828
        %2830 = vdwg.mxu0
        %v2831 = vmul.f32 %v2829, 0.00390625
        %vm2832 = vcmask 253952
        %2833 = vst.msk [vmem:[%s189] sm:$0x1] %vm2832, %v2831
        %s2834 = sand.u32 %s115, 1
        %s2835 = scalar_lea.sflag [#allocation4], %s2834
        %s2836 = sand.u32 %s115, 1
        %s2837 = scalar_lea.vmem [#allocation3], %s2836
        // Predicated region
        $region37: #{tpu_custom_call.1} parent=35 // pred_check
          %p2838 = pneg %p125
        $region38: #{tpu_custom_call.1} parent=35 // pred_check_branch
          %2840 = sbr.rel (%p2838) target = $region40
        $region39: #{tpu_custom_call.1} parent=35 // pred_region
          %2842 = vsyncadd %s2835, 0
          %s2843 = scalar_lea.hbm %s4, %s18
          %s2845 = sshll.u32 %s2837, 4
          %s2846 = int_to_ptr.vmem [resolvable:$true] %s2845
          %s2847 = sshll.u32 %s2843, 4
          %s2848 = int_to_ptr.hbm [resolvable:$true] %s2847
          %2850 = dma.vmem_to_hbm [thread:$0]  %s2846, 16, %s2848, %s2835
        $region40: #{tpu_custom_call.1} parent=35 // pred_fallthru
          _
      $region36: #{tpu_custom_call.1} parent=5 // pred_fallthru
        _
      %p2851 = scmp.le.s32.totalorder 2, %s13
      // Predicated region
      $region41: #{tpu_custom_call.1} parent=5 // pred_check
        %p2852 = pneg %p2851
      $region42: #{tpu_custom_call.1} parent=5 // pred_check_branch
        %2854 = sbr.rel (%p2852) target = $region44
      $region43: #{tpu_custom_call.1} parent=5 // pred_region
        %s2855 = ssub.s32 %s13, 2
        // Predicated region
        $region45: #{tpu_custom_call.1} parent=43 // pred_check
          %p2856 = pneg %p131
        $region46: #{tpu_custom_call.1} parent=43 // pred_check_branch
          %2858 = sbr.rel (%p2856) target = $region48
        $region47: #{tpu_custom_call.1} parent=43 // pred_region
          %s2859 = sand.u32 %s116, 1
          %s2860 = scalar_lea.sflag [#allocation4], %s2859
          %s2861 = sand.u32 %s116, 1
          %s2862 = scalar_lea.vmem [#allocation3], %s2861
          %2864 = dma.done %s2860, 16
        $region48: #{tpu_custom_call.1} parent=43 // pred_fallthru
          _
      $region44: #{tpu_custom_call.1} parent=5 // pred_fallthru
        _
    $region6: #{tpu_custom_call.1} parent=1 // loop_footer
      %s17 = sadd.s32 1, %s13
    $region7: #{tpu_custom_call.1} parent=1 // loop_footer_branch
      %12 = sbr.rel target = $region3
    $region8: #{tpu_custom_call.1} parent=1 // loop_exit
      _
    %2865 = vsyncpa [#allocation4], 1
    %s2866 = scalar_lea.sflag [#allocation4], 1
    %2867 = vsyncpa %s2866, 1

</llo_original>
